<compile_context>
chip_gen: v7x
topology: tpu7x:2x2x1
jax: 0.10.0
libtpu: 0.0.40
codegen_flags: <defaults>
</compile_context>

<pallas_src>
import functools
import math

import jax
import jax.numpy as jnp
from jax.experimental import pallas as pl
from jax.experimental.pallas import tpu as pltpu


# Row indices of the packed per-layer parameter slab.
_G1, _BT1, _BQ, _BK, _BV, _BO, _G2, _BT2, _B1, _B2 = range(10)
_NUM_PRM_ROWS = 10


def _layernorm(v, g, b, eps=1e-6):
    mu = jnp.mean(v, axis=-1, keepdims=True)
    var = jnp.mean((v - mu) ** 2, axis=-1, keepdims=True)
    return (v - mu) * jax.lax.rsqrt(var + eps) * g + b


def _gelu_tanh(v):
    # TODO(synk): PyTorch nn.GELU() defaults to exact erf-GELU; tanh approximation used in-kernel.
    return 0.5 * v * (1.0 + jnp.tanh(0.7978845608028654 * (v + 0.044715 * v * v * v)))


def transformer_kernel(x_ref, prm_ref, wq_ref, wk_ref, wv_ref, wo_ref,
                       w1_ref, w2_ref, pool_ref, expand_ref, o_ref,
                       *, dim, heads, mlp_dim, scale):
    layer = pl.program_id(1)

    # First layer for this batch block: seed the resident residual stream.
    @pl.when(layer == 0)
    def _():
        o_ref[...] = x_ref[...]

    x = o_ref[...].astype(jnp.float32)                     # (N, D) residual stream
    hd = heads * dim

    g1 = prm_ref[_G1:_G1 + 1, 0:dim]
    bt1 = prm_ref[_BT1:_BT1 + 1, 0:dim]
    bq = prm_ref[_BQ:_BQ + 1, 0:hd]
    bk = prm_ref[_BK:_BK + 1, 0:hd]
    bv = prm_ref[_BV:_BV + 1, 0:hd]
    bo = prm_ref[_BO:_BO + 1, 0:dim]
    g2 = prm_ref[_G2:_G2 + 1, 0:dim]
    bt2 = prm_ref[_BT2:_BT2 + 1, 0:dim]
    b1 = prm_ref[_B1:_B1 + 1, 0:mlp_dim]
    b2 = prm_ref[_B2:_B2 + 1, 0:dim]

    # ---- Residual(LayerNormalize(dim, Attention)) ----
    y = _layernorm(x, g1, bt1)                             # (N, D)

    # All heads fused into single lane-dense matmuls (block-diagonal weights).
    q = jnp.dot(y[0:1, :], wq_ref[...], preferred_element_type=jnp.float32) + bq   # (1, H*D)
    k = jnp.dot(y, wk_ref[...], preferred_element_type=jnp.float32) + bk           # (N, H*D)
    v = jnp.dot(y, wv_ref[...], preferred_element_type=jnp.float32) + bv           # (N, H*D)

    # dots[j, h] = sum over head-h lane block of q * k[j]   (pool is a 0/1 matrix)
    dots = jnp.dot(q * k, pool_ref[...], preferred_element_type=jnp.float32) * scale  # (N, H)
    dots = dots - jnp.max(dots, axis=0, keepdims=True)
    e = jnp.exp(dots)
    attn = e * pl.reciprocal(jnp.sum(e, axis=0, keepdims=True), approx=True)           # (N, H)

    # Broadcast attention weights back onto head lane blocks, reduce over sequence.
    attn_b = jnp.dot(attn, expand_ref[...], preferred_element_type=jnp.float32)        # (N, H*D)
    out_vec = jnp.sum(attn_b * v, axis=0, keepdims=True)                               # (1, H*D)
    attn_out = jnp.dot(out_vec, wo_ref[...], preferred_element_type=jnp.float32) + bo  # (1, D)

    x = x + attn_out                                       # residual; broadcasts over N rows

    # ---- Residual(LayerNormalize(dim, MLP_Block)) ----
    z = _layernorm(x, g2, bt2)
    h1 = jnp.dot(z, w1_ref[...], preferred_element_type=jnp.float32) + b1              # (N, mlp)
    h1 = _gelu_tanh(h1)
    h2 = jnp.dot(h1, w2_ref[...], preferred_element_type=jnp.float32) + b2             # (N, D)

    o_ref[...] = (x + h2).astype(o_ref.dtype)


def pack_transformer_params(layer_params, *, dim, heads, mlp_dim):
    """Host-side packing: block-diagonal head fusion + stacked per-layer weights."""
    width = max(dim, heads * dim, mlp_dim)
    eye_h = jnp.eye(heads, dtype=jnp.float32)

    def pad_row(r):
        return jnp.pad(r, ((0, 0), (0, width - r.shape[1])))

    def one_layer(p):
        wq = jnp.kron(eye_h, p['wqT'])                     # (D, H*D) block-diagonal
        wk = jnp.kron(eye_h, p['wkT'])
        wv = jnp.kron(eye_h, p['wvT'])
        prm = jnp.concatenate([
            pad_row(p['g1']), pad_row(p['bt1']),
            pad_row(jnp.tile(p['bq'], (1, heads))),
            pad_row(jnp.tile(p['bk'], (1, heads))),
            pad_row(jnp.tile(p['bv'], (1, heads))),
            pad_row(p['bo']),
            pad_row(p['g2']), pad_row(p['bt2']),
            pad_row(p['b1']), pad_row(p['b2']),
        ], axis=0)                                         # (10, width)
        return wq, wk, wv, p['woT'], p['w1T'], p['w2T'], prm

    per = [one_layer(p) for p in layer_params]
    stacked = [jnp.stack([t[i] for t in per], axis=0) for i in range(7)]
    wq, wk, wv, wo, w1, w2, prm = stacked

    pool = jnp.kron(eye_h, jnp.ones((dim, 1), jnp.float32))   # (H*D, H), 0/1
    expand = pool.T                                           # (H, H*D), 0/1
    return dict(wq=wq, wk=wk, wv=wv, wo=wo, w1=w1, w2=w2, prm=prm,
                pool=pool, expand=expand)


def transformer_forward(x, layer_params, *, heads):
    b, n, dim = x.shape
    depth = len(layer_params)
    mlp_dim = layer_params[0]['w1T'].shape[1]
    hd = heads * dim
    packed = pack_transformer_params(layer_params, dim=dim, heads=heads, mlp_dim=mlp_dim)
    width = packed['prm'].shape[-1]
    scale = dim ** (-0.5)

    kernel = functools.partial(transformer_kernel, dim=dim, heads=heads,
                               mlp_dim=mlp_dim, scale=scale)

    def layer_spec(r, c):      # per-layer weight, constant across the batch axis
        return pl.BlockSpec((None, r, c), lambda bi, li: (li, 0, 0))

    def const_spec(r, c):      # layer-independent constant, fetched once
        return pl.BlockSpec((r, c), lambda bi, li: (0, 0))

    batch_spec = pl.BlockSpec((None, n, dim), lambda bi, li: (bi, 0, 0))

    return pl.pallas_call(
        kernel,
        out_shape=jax.ShapeDtypeStruct((b, n, dim), x.dtype),
        grid=(b, depth),
        in_specs=[
            batch_spec,                         # x (read only at layer 0)
            layer_spec(_NUM_PRM_ROWS, width),   # packed LN / bias params
            layer_spec(dim, hd),                # Wq  (block-diagonal, all heads)
            layer_spec(dim, hd),                # Wk
            layer_spec(dim, hd),                # Wv
            layer_spec(hd, dim),                # Wo  (nn1)
            layer_spec(dim, mlp_dim),           # W1
            layer_spec(mlp_dim, dim),           # W2
            const_spec(hd, heads),              # head pooling matrix
            const_spec(heads, hd),              # head broadcast matrix
        ],
        out_specs=batch_spec,                   # residual stream, resident across layers
        compiler_params=pltpu.CompilerParams(
            dimension_semantics=("parallel", "arbitrary"),
            vmem_limit_bytes=32 * 1024 * 1024),
    )(x, packed['prm'], packed['wq'], packed['wk'], packed['wv'],
      packed['wo'], packed['w1'], packed['w2'], packed['pool'], packed['expand'])


def init_layer_params(key, dim, heads, mlp_dim):
    dh = dim // heads
    ks = jax.random.split(key, 12)

    def u(k, shape, fan_in):
        bound = 1.0 / math.sqrt(fan_in)
        return jax.random.uniform(k, shape, jnp.float32, -bound, bound)

    return dict(
        g1=jnp.ones((1, dim), jnp.float32), bt1=jnp.zeros((1, dim), jnp.float32),
        wqT=u(ks[0], (dh, dim), dh), bq=u(ks[1], (1, dim), dh),
        wkT=u(ks[2], (dh, dim), dh), bk=u(ks[3], (1, dim), dh),
        wvT=u(ks[4], (dh, dim), dh), bv=u(ks[5], (1, dim), dh),
        woT=u(ks[6], (heads * dim, dim), heads * dim), bo=u(ks[7], (1, dim), heads * dim),
        g2=jnp.ones((1, dim), jnp.float32), bt2=jnp.zeros((1, dim), jnp.float32),
        w1T=u(ks[8], (dim, mlp_dim), dim), b1=u(ks[9], (1, mlp_dim), dim),
        w2T=u(ks[10], (mlp_dim, dim), mlp_dim), b2=u(ks[11], (1, dim), mlp_dim),
    )


def reference_layer(x, p, heads):
    """Pure-JAX reference mirroring the PyTorch forward (dropout = identity)."""
    b, n, d = x.shape
    dh = d // heads
    scale = d ** (-0.5)

    def ln(v, g, bb):
        mu = v.mean(-1, keepdims=True)
        var = ((v - mu) ** 2).mean(-1, keepdims=True)
        return (v - mu) / jnp.sqrt(var + 1e-6) * g + bb

    y = ln(x, p['g1'], p['bt1'])
    q = (y[:, 0:1, :].reshape(b, 1, heads, dh) @ p['wqT'] + p['bq']).transpose(0, 2, 1, 3)
    k = (y.reshape(b, n, heads, dh) @ p['wkT'] + p['bk']).transpose(0, 2, 1, 3)
    v = (y.reshape(b, n, heads, dh) @ p['wvT'] + p['bv']).transpose(0, 2, 1, 3)
    dots = jnp.einsum('bhid,bhjd->bhij', q, k) * scale
    attn = jax.nn.softmax(dots, axis=-1)
    out = jnp.einsum('bhij,bhjd->bhid', attn, v)
    out = out.transpose(0, 2, 1, 3).reshape(b, 1, heads * d)
    out = out @ p['woT'] + p['bo']
    x = x + out
    z = ln(x, p['g2'], p['bt2'])
    h1 = z @ p['w1T'] + p['b1']
    h1 = 0.5 * h1 * (1.0 + jnp.tanh(0.7978845608028654 * (h1 + 0.044715 * h1 ** 3)))
    h2 = h1 @ p['w2T'] + p['b2']
    return x + h2


if __name__ == "__main__":
    B, N, DIM, HEADS, MLP_DIM, DEPTH = 2, 8, 32, 4, 64, 2

    key = jax.random.PRNGKey(0)
    kx, *kls = jax.random.split(key, DEPTH + 1)
    x = jax.random.normal(kx, (B, N, DIM), jnp.float32)
    layer_params = [init_layer_params(k, DIM, HEADS, MLP_DIM) for k in kls]

    out = transformer_forward(x, layer_params, heads=HEADS)
    out = jax.block_until_ready(out)

    # High-precision pure-JAX ground truth.
    with jax.default_matmul_precision("float32"):
        ref = x
        for p in layer_params:
            ref = reference_layer(ref, p, HEADS)
        ref = jax.block_until_ready(ref)

    max_err = float(jnp.max(jnp.abs(out - ref)))
    # Tolerance allows for TPU MXU bf16-pass f32 matmuls (fused-head contraction
    # structure differs from the reference) and the approximate softmax reciprocal.
    assert max_err < 2e-2, f"max abs err = {max_err}"

    print("KERNEL_OK")
</pallas_src>

<mosaic_0001>
module attributes {stable_mosaic.version = 11 : i64} {
  func.func @transformer_kernel(%arg0: i32, %arg1: i32, %arg2: memref<1x8x32xf32, #tpu.memory_space<vmem>>, %arg3: memref<1x10x128xf32, #tpu.memory_space<vmem>>, %arg4: memref<1x32x128xf32, #tpu.memory_space<vmem>>, %arg5: memref<1x32x128xf32, #tpu.memory_space<vmem>>, %arg6: memref<1x32x128xf32, #tpu.memory_space<vmem>>, %arg7: memref<1x128x32xf32, #tpu.memory_space<vmem>>, %arg8: memref<1x32x64xf32, #tpu.memory_space<vmem>>, %arg9: memref<1x64x32xf32, #tpu.memory_space<vmem>>, %arg10: memref<128x4xf32, #tpu.memory_space<vmem>>, %arg11: memref<4x128xf32, #tpu.memory_space<vmem>>, %arg12: memref<1x8x32xf32, #tpu.memory_space<vmem>>) attributes {dimension_semantics = [#tpu.dimension_semantics<parallel>, #tpu.dimension_semantics<arbitrary>], iteration_bounds = array<i64: 2, 2>, scalar_prefetch = 0 : i64, scratch_operands = 0 : i64, tpu.core_type = #tpu.core_type<tc>, window_params = [{transform_indices = @transform_0, window_bounds = array<i64: 1, 8, 32>}, {transform_indices = @transform_1, window_bounds = array<i64: 1, 10, 128>}, {transform_indices = @transform_2, window_bounds = array<i64: 1, 32, 128>}, {transform_indices = @transform_3, window_bounds = array<i64: 1, 32, 128>}, {transform_indices = @transform_4, window_bounds = array<i64: 1, 32, 128>}, {transform_indices = @transform_5, window_bounds = array<i64: 1, 128, 32>}, {transform_indices = @transform_6, window_bounds = array<i64: 1, 32, 64>}, {transform_indices = @transform_7, window_bounds = array<i64: 1, 64, 32>}, {pipeline_mode = #tpu.pipeline_mode<synchronous>, transform_indices = @transform_8, window_bounds = array<i64: 128, 4>}, {pipeline_mode = #tpu.pipeline_mode<synchronous>, transform_indices = @transform_9, window_bounds = array<i64: 4, 128>}, {transform_indices = @transform_10, window_bounds = array<i64: 1, 8, 32>}]} {
    %c0_i32 = arith.constant 0 : i32
    %0 = arith.cmpi eq, %arg1, %c0_i32 : i32
    %1 = arith.extui %0 : i1 to i32
    %c0_i32_0 = arith.constant 0 : i32
    %2 = arith.cmpi ne, %1, %c0_i32_0 : i32
    scf.if %2 {
      %c0_74 = arith.constant 0 : index
      %c0_75 = arith.constant 0 : index
      %c0_76 = arith.constant 0 : index
      %138 = vector.load %arg2[%c0_74, %c0_75, %c0_76] : memref<1x8x32xf32, #tpu.memory_space<vmem>>, vector<1x8x32xf32>
      %139 = vector.shape_cast %138 : vector<1x8x32xf32> to vector<8x32xf32>
      %c0_77 = arith.constant 0 : index
      %c0_78 = arith.constant 0 : index
      %c0_79 = arith.constant 0 : index
      %140 = vector.load %arg12[%c0_77, %c0_78, %c0_79] : memref<1x8x32xf32, #tpu.memory_space<vmem>>, vector<1x8x32xf32>
      %141 = vector.shape_cast %140 : vector<1x8x32xf32> to vector<8x32xf32>
      %142 = vector.shape_cast %139 : vector<8x32xf32> to vector<1x8x32xf32>
      tpu.vector_store %arg12[%c0_77, %c0_78, %c0_79], %142 {strides = array<i32>} : memref<1x8x32xf32, #tpu.memory_space<vmem>>, vector<1x8x32xf32>,
    } else {
    }
    %c0 = arith.constant 0 : index
    %c0_1 = arith.constant 0 : index
    %c0_2 = arith.constant 0 : index
    %3 = vector.load %arg12[%c0, %c0_1, %c0_2] : memref<1x8x32xf32, #tpu.memory_space<vmem>>, vector<1x8x32xf32>
    %4 = vector.shape_cast %3 : vector<1x8x32xf32> to vector<8x32xf32>
    %c0_3 = arith.constant 0 : index
    %c0_4 = arith.constant 0 : index
    %c0_5 = arith.constant 0 : index
    %5 = vector.load %arg3[%c0_3, %c0_4, %c0_5] : memref<1x10x128xf32, #tpu.memory_space<vmem>>, vector<1x1x32xf32>
    %6 = vector.shape_cast %5 : vector<1x1x32xf32> to vector<1x32xf32>
    %c0_6 = arith.constant 0 : index
    %c1 = arith.constant 1 : index
    %c0_7 = arith.constant 0 : index
    %7 = vector.load %arg3[%c0_6, %c1, %c0_7] : memref<1x10x128xf32, #tpu.memory_space<vmem>>, vector<1x1x32xf32>
    %8 = vector.shape_cast %7 : vector<1x1x32xf32> to vector<1x32xf32>
    %c0_8 = arith.constant 0 : index
    %c2 = arith.constant 2 : index
    %c0_9 = arith.constant 0 : index
    %9 = vector.load %arg3[%c0_8, %c2, %c0_9] : memref<1x10x128xf32, #tpu.memory_space<vmem>>, vector<1x1x128xf32>
    %10 = vector.shape_cast %9 : vector<1x1x128xf32> to vector<1x128xf32>
    %c0_10 = arith.constant 0 : index
    %c3 = arith.constant 3 : index
    %c0_11 = arith.constant 0 : index
    %11 = vector.load %arg3[%c0_10, %c3, %c0_11] : memref<1x10x128xf32, #tpu.memory_space<vmem>>, vector<1x1x128xf32>
    %12 = vector.shape_cast %11 : vector<1x1x128xf32> to vector<1x128xf32>
    %c0_12 = arith.constant 0 : index
    %c4 = arith.constant 4 : index
    %c0_13 = arith.constant 0 : index
    %13 = vector.load %arg3[%c0_12, %c4, %c0_13] : memref<1x10x128xf32, #tpu.memory_space<vmem>>, vector<1x1x128xf32>
    %14 = vector.shape_cast %13 : vector<1x1x128xf32> to vector<1x128xf32>
    %c0_14 = arith.constant 0 : index
    %c5 = arith.constant 5 : index
    %c0_15 = arith.constant 0 : index
    %15 = vector.load %arg3[%c0_14, %c5, %c0_15] : memref<1x10x128xf32, #tpu.memory_space<vmem>>, vector<1x1x32xf32>
    %16 = vector.shape_cast %15 : vector<1x1x32xf32> to vector<1x32xf32>
    %c0_16 = arith.constant 0 : index
    %c6 = arith.constant 6 : index
    %c0_17 = arith.constant 0 : index
    %17 = vector.load %arg3[%c0_16, %c6, %c0_17] : memref<1x10x128xf32, #tpu.memory_space<vmem>>, vector<1x1x32xf32>
    %18 = vector.shape_cast %17 : vector<1x1x32xf32> to vector<1x32xf32>
    %c0_18 = arith.constant 0 : index
    %c7 = arith.constant 7 : index
    %c0_19 = arith.constant 0 : index
    %19 = vector.load %arg3[%c0_18, %c7, %c0_19] : memref<1x10x128xf32, #tpu.memory_space<vmem>>, vector<1x1x32xf32>
    %20 = vector.shape_cast %19 : vector<1x1x32xf32> to vector<1x32xf32>
    %c0_20 = arith.constant 0 : index
    %c8 = arith.constant 8 : index
    %c0_21 = arith.constant 0 : index
    %21 = vector.load %arg3[%c0_20, %c8, %c0_21] : memref<1x10x128xf32, #tpu.memory_space<vmem>>, vector<1x1x64xf32>
    %22 = vector.shape_cast %21 : vector<1x1x64xf32> to vector<1x64xf32>
    %c0_22 = arith.constant 0 : index
    %c9 = arith.constant 9 : index
    %c0_23 = arith.constant 0 : index
    %23 = vector.load %arg3[%c0_22, %c9, %c0_23] : memref<1x10x128xf32, #tpu.memory_space<vmem>>, vector<1x1x32xf32>
    %24 = vector.shape_cast %23 : vector<1x1x32xf32> to vector<1x32xf32>
    %cst = arith.constant dense<0.000000e+00> : vector<8xf32>
    %25 = vector.multi_reduction <add>, %4, %cst [1] : vector<8x32xf32> to vector<8xf32>
    %26 = vector.shape_cast %25 : vector<8xf32> to vector<8x1xf32>
    %cst_24 = arith.constant 3.200000e+01 : f32
    %27 = vector.broadcast %cst_24 : f32 to vector<8x1xf32>
    %28 = arith.divf %26, %27 : vector<8x1xf32>
    %29 = vector.broadcast %28 : vector<8x1xf32> to vector<8x32xf32>
    %30 = arith.subf %4, %29 : vector<8x32xf32>
    %31 = arith.mulf %30, %30 : vector<8x32xf32>
    %cst_25 = arith.constant dense<0.000000e+00> : vector<8xf32>
    %32 = vector.multi_reduction <add>, %31, %cst_25 [1] : vector<8x32xf32> to vector<8xf32>
    %33 = vector.shape_cast %32 : vector<8xf32> to vector<8x1xf32>
    %cst_26 = arith.constant 3.200000e+01 : f32
    %34 = vector.broadcast %cst_26 : f32 to vector<8x1xf32>
    %35 = arith.divf %33, %34 : vector<8x1xf32>
    %36 = vector.broadcast %28 : vector<8x1xf32> to vector<8x32xf32>
    %37 = arith.subf %4, %36 : vector<8x32xf32>
    %cst_27 = arith.constant 9.99999997E-7 : f32
    %38 = vector.broadcast %cst_27 : f32 to vector<8x1xf32>
    %39 = arith.addf %35, %38 : vector<8x1xf32>
    %40 = math.rsqrt %39 : vector<8x1xf32>
    %41 = vector.broadcast %40 : vector<8x1xf32> to vector<8x32xf32>
    %42 = arith.mulf %37, %41 : vector<8x32xf32>
    %43 = vector.broadcast %6 : vector<1x32xf32> to vector<8x32xf32>
    %44 = arith.mulf %42, %43 : vector<8x32xf32>
    %45 = vector.broadcast %8 : vector<1x32xf32> to vector<8x32xf32>
    %46 = arith.addf %44, %45 : vector<8x32xf32>
    %47 = vector.extract_strided_slice %46 {offsets = [0, 0], sizes = [1, 32], strides = [1, 1]} : vector<8x32xf32> to vector<1x32xf32>
    %c0_28 = arith.constant 0 : index
    %c0_29 = arith.constant 0 : index
    %c0_30 = arith.constant 0 : index
    %48 = vector.load %arg4[%c0_28, %c0_29, %c0_30] : memref<1x32x128xf32, #tpu.memory_space<vmem>>, vector<1x32x128xf32>
    %49 = vector.shape_cast %48 : vector<1x32x128xf32> to vector<32x128xf32>
    %cst_31 = arith.constant dense<0.000000e+00> : vector<1x128xf32>
    %50 = tpu.matmul %47, %49, %cst_31 {dimension_numbers = #tpu.dot_dimension_numbers<[1], [0], [0], [1], [0, 0, 1, 1], [], []>} : vector<1x32xf32>, vector<32x128xf32>, vector<1x128xf32> -> vector<1x128xf32>
    %51 = arith.addf %50, %10 : vector<1x128xf32>
    %c0_32 = arith.constant 0 : index
    %c0_33 = arith.constant 0 : index
    %c0_34 = arith.constant 0 : index
    %52 = vector.load %arg5[%c0_32, %c0_33, %c0_34] : memref<1x32x128xf32, #tpu.memory_space<vmem>>, vector<1x32x128xf32>
    %53 = vector.shape_cast %52 : vector<1x32x128xf32> to vector<32x128xf32>
    %cst_35 = arith.constant dense<0.000000e+00> : vector<8x128xf32>
    %54 = tpu.matmul %46, %53, %cst_35 {dimension_numbers = #tpu.dot_dimension_numbers<[1], [0], [0], [1], [0, 0, 1, 1], [], []>} : vector<8x32xf32>, vector<32x128xf32>, vector<8x128xf32> -> vector<8x128xf32>
    %55 = vector.broadcast %12 : vector<1x128xf32> to vector<8x128xf32>
    %56 = arith.addf %54, %55 : vector<8x128xf32>
    %c0_36 = arith.constant 0 : index
    %c0_37 = arith.constant 0 : index
    %c0_38 = arith.constant 0 : index
    %57 = vector.load %arg6[%c0_36, %c0_37, %c0_38] : memref<1x32x128xf32, #tpu.memory_space<vmem>>, vector<1x32x128xf32>
    %58 = vector.shape_cast %57 : vector<1x32x128xf32> to vector<32x128xf32>
    %cst_39 = arith.constant dense<0.000000e+00> : vector<8x128xf32>
    %59 = tpu.matmul %46, %58, %cst_39 {dimension_numbers = #tpu.dot_dimension_numbers<[1], [0], [0], [1], [0, 0, 1, 1], [], []>} : vector<8x32xf32>, vector<32x128xf32>, vector<8x128xf32> -> vector<8x128xf32>
    %60 = vector.broadcast %14 : vector<1x128xf32> to vector<8x128xf32>
    %61 = arith.addf %59, %60 : vector<8x128xf32>
    %62 = vector.broadcast %51 : vector<1x128xf32> to vector<8x128xf32>
    %63 = arith.mulf %62, %56 : vector<8x128xf32>
    %c0_40 = arith.constant 0 : index
    %c0_41 = arith.constant 0 : index
    %64 = vector.load %arg10[%c0_40, %c0_41] : memref<128x4xf32, #tpu.memory_space<vmem>>, vector<128x4xf32>
    %cst_42 = arith.constant dense<0.000000e+00> : vector<8x4xf32>
    %65 = tpu.matmul %63, %64, %cst_42 {dimension_numbers = #tpu.dot_dimension_numbers<[1], [0], [0], [1], [0, 0, 1, 1], [], []>} : vector<8x128xf32>, vector<128x4xf32>, vector<8x4xf32> -> vector<8x4xf32>
    %cst_43 = arith.constant 0.176776692 : f32
    %66 = vector.broadcast %cst_43 : f32 to vector<8x4xf32>
    %67 = arith.mulf %65, %66 : vector<8x4xf32>
    %cst_44 = arith.constant dense<0xFF800000> : vector<4xf32>
    %68 = vector.multi_reduction <maximumf>, %67, %cst_44 [0] : vector<8x4xf32> to vector<4xf32>
    %69 = vector.shape_cast %68 : vector<4xf32> to vector<1x4xf32>
    %70 = vector.broadcast %69 : vector<1x4xf32> to vector<8x4xf32>
    %71 = arith.subf %67, %70 : vector<8x4xf32>
    %72 = math.exp %71 : vector<8x4xf32>
    %cst_45 = arith.constant dense<0.000000e+00> : vector<4xf32>
    %73 = vector.multi_reduction <add>, %72, %cst_45 [0] : vector<8x4xf32> to vector<4xf32>
    %74 = vector.shape_cast %73 : vector<4xf32> to vector<1x4xf32>
    %75 = tpu.reciprocal %74 {approx = true} : vector<1x4xf32> -> vector<1x4xf32>
    %76 = vector.broadcast %75 : vector<1x4xf32> to vector<8x4xf32>
    %77 = arith.mulf %72, %76 : vector<8x4xf32>
    %c0_46 = arith.constant 0 : index
    %c0_47 = arith.constant 0 : index
    %78 = vector.load %arg11[%c0_46, %c0_47] : memref<4x128xf32, #tpu.memory_space<vmem>>, vector<4x128xf32>
    %cst_48 = arith.constant dense<0.000000e+00> : vector<8x128xf32>
    %79 = tpu.matmul %77, %78, %cst_48 {dimension_numbers = #tpu.dot_dimension_numbers<[1], [0], [0], [1], [0, 0, 1, 1], [], []>} : vector<8x4xf32>, vector<4x128xf32>, vector<8x128xf32> -> vector<8x128xf32>
    %80 = arith.mulf %79, %61 : vector<8x128xf32>
    %cst_49 = arith.constant dense<0.000000e+00> : vector<128xf32>
    %81 = vector.multi_reduction <add>, %80, %cst_49 [0] : vector<8x128xf32> to vector<128xf32>
    %82 = vector.shape_cast %81 : vector<128xf32> to vector<1x128xf32>
    %c0_50 = arith.constant 0 : index
    %c0_51 = arith.constant 0 : index
    %c0_52 = arith.constant 0 : index
    %83 = vector.load %arg7[%c0_50, %c0_51, %c0_52] : memref<1x128x32xf32, #tpu.memory_space<vmem>>, vector<1x128x32xf32>
    %84 = vector.shape_cast %83 : vector<1x128x32xf32> to vector<128x32xf32>
    %cst_53 = arith.constant dense<0.000000e+00> : vector<1x32xf32>
    %85 = tpu.matmul %82, %84, %cst_53 {dimension_numbers = #tpu.dot_dimension_numbers<[1], [0], [0], [1], [0, 0, 1, 1], [], []>} : vector<1x128xf32>, vector<128x32xf32>, vector<1x32xf32> -> vector<1x32xf32>
    %86 = arith.addf %85, %16 : vector<1x32xf32>
    %87 = vector.broadcast %86 : vector<1x32xf32> to vector<8x32xf32>
    %88 = arith.addf %4, %87 : vector<8x32xf32>
    %cst_54 = arith.constant dense<0.000000e+00> : vector<8xf32>
    %89 = vector.multi_reduction <add>, %88, %cst_54 [1] : vector<8x32xf32> to vector<8xf32>
    %90 = vector.shape_cast %89 : vector<8xf32> to vector<8x1xf32>
    %cst_55 = arith.constant 3.200000e+01 : f32
    %91 = vector.broadcast %cst_55 : f32 to vector<8x1xf32>
    %92 = arith.divf %90, %91 : vector<8x1xf32>
    %93 = vector.broadcast %92 : vector<8x1xf32> to vector<8x32xf32>
    %94 = arith.subf %88, %93 : vector<8x32xf32>
    %95 = arith.mulf %94, %94 : vector<8x32xf32>
    %cst_56 = arith.constant dense<0.000000e+00> : vector<8xf32>
    %96 = vector.multi_reduction <add>, %95, %cst_56 [1] : vector<8x32xf32> to vector<8xf32>
    %97 = vector.shape_cast %96 : vector<8xf32> to vector<8x1xf32>
    %cst_57 = arith.constant 3.200000e+01 : f32
    %98 = vector.broadcast %cst_57 : f32 to vector<8x1xf32>
    %99 = arith.divf %97, %98 : vector<8x1xf32>
    %100 = vector.broadcast %92 : vector<8x1xf32> to vector<8x32xf32>
    %101 = arith.subf %88, %100 : vector<8x32xf32>
    %cst_58 = arith.constant 9.99999997E-7 : f32
    %102 = vector.broadcast %cst_58 : f32 to vector<8x1xf32>
    %103 = arith.addf %99, %102 : vector<8x1xf32>
    %104 = math.rsqrt %103 : vector<8x1xf32>
    %105 = vector.broadcast %104 : vector<8x1xf32> to vector<8x32xf32>
    %106 = arith.mulf %101, %105 : vector<8x32xf32>
    %107 = vector.broadcast %18 : vector<1x32xf32> to vector<8x32xf32>
    %108 = arith.mulf %106, %107 : vector<8x32xf32>
    %109 = vector.broadcast %20 : vector<1x32xf32> to vector<8x32xf32>
    %110 = arith.addf %108, %109 : vector<8x32xf32>
    %c0_59 = arith.constant 0 : index
    %c0_60 = arith.constant 0 : index
    %c0_61 = arith.constant 0 : index
    %111 = vector.load %arg8[%c0_59, %c0_60, %c0_61] : memref<1x32x64xf32, #tpu.memory_space<vmem>>, vector<1x32x64xf32>
    %112 = vector.shape_cast %111 : vector<1x32x64xf32> to vector<32x64xf32>
    %cst_62 = arith.constant dense<0.000000e+00> : vector<8x64xf32>
    %113 = tpu.matmul %110, %112, %cst_62 {dimension_numbers = #tpu.dot_dimension_numbers<[1], [0], [0], [1], [0, 0, 1, 1], [], []>} : vector<8x32xf32>, vector<32x64xf32>, vector<8x64xf32> -> vector<8x64xf32>
    %114 = vector.broadcast %22 : vector<1x64xf32> to vector<8x64xf32>
    %115 = arith.addf %113, %114 : vector<8x64xf32>
    %cst_63 = arith.constant 5.000000e-01 : f32
    %116 = vector.broadcast %cst_63 : f32 to vector<8x64xf32>
    %117 = arith.mulf %116, %115 : vector<8x64xf32>
    %cst_64 = arith.constant 4.471500e-02 : f32
    %118 = vector.broadcast %cst_64 : f32 to vector<8x64xf32>
    %119 = arith.mulf %118, %115 : vector<8x64xf32>
    %120 = arith.mulf %119, %115 : vector<8x64xf32>
    %121 = arith.mulf %120, %115 : vector<8x64xf32>
    %122 = arith.addf %115, %121 : vector<8x64xf32>
    %cst_65 = arith.constant 0.797884583 : f32
    %123 = vector.broadcast %cst_65 : f32 to vector<8x64xf32>
    %124 = arith.mulf %123, %122 : vector<8x64xf32>
    %125 = math.tanh %124 : vector<8x64xf32>
    %cst_66 = arith.constant 1.000000e+00 : f32
    %126 = vector.broadcast %cst_66 : f32 to vector<8x64xf32>
    %127 = arith.addf %126, %125 : vector<8x64xf32>
    %128 = arith.mulf %117, %127 : vector<8x64xf32>
    %c0_67 = arith.constant 0 : index
    %c0_68 = arith.constant 0 : index
    %c0_69 = arith.constant 0 : index
    %129 = vector.load %arg9[%c0_67, %c0_68, %c0_69] : memref<1x64x32xf32, #tpu.memory_space<vmem>>, vector<1x64x32xf32>
    %130 = vector.shape_cast %129 : vector<1x64x32xf32> to vector<64x32xf32>
    %cst_70 = arith.constant dense<0.000000e+00> : vector<8x32xf32>
    %131 = tpu.matmul %128, %130, %cst_70 {dimension_numbers = #tpu.dot_dimension_numbers<[1], [0], [0], [1], [0, 0, 1, 1], [], []>} : vector<8x64xf32>, vector<64x32xf32>, vector<8x32xf32> -> vector<8x32xf32>
    %132 = vector.broadcast %24 : vector<1x32xf32> to vector<8x32xf32>
    %133 = arith.addf %131, %132 : vector<8x32xf32>
    %134 = arith.addf %88, %133 : vector<8x32xf32>
    %c0_71 = arith.constant 0 : index
    %c0_72 = arith.constant 0 : index
    %c0_73 = arith.constant 0 : index
    %135 = vector.load %arg12[%c0_71, %c0_72, %c0_73] : memref<1x8x32xf32, #tpu.memory_space<vmem>>, vector<1x8x32xf32>
    %136 = vector.shape_cast %135 : vector<1x8x32xf32> to vector<8x32xf32>
    %137 = vector.shape_cast %134 : vector<8x32xf32> to vector<1x8x32xf32>
    tpu.vector_store %arg12[%c0_71, %c0_72, %c0_73], %137 {strides = array<i32>} : memref<1x8x32xf32, #tpu.memory_space<vmem>>, vector<1x8x32xf32>,
    return
  }
  func.func @transform_0(%arg0: i32, %arg1: i32) -> (i32, i32, i32) {
    %c0_i32 = arith.constant 0 : i32
    %c0_i32_0 = arith.constant 0 : i32
    %c0_i32_1 = arith.constant 0 : i32
    return %arg0, %c0_i32, %c0_i32_0 : i32, i32, i32
  }
  func.func @transform_1(%arg0: i32, %arg1: i32) -> (i32, i32, i32) {
    %c0_i32 = arith.constant 0 : i32
    %c0_i32_0 = arith.constant 0 : i32
    %c0_i32_1 = arith.constant 0 : i32
    return %arg1, %c0_i32, %c0_i32_0 : i32, i32, i32
  }
  func.func @transform_2(%arg0: i32, %arg1: i32) -> (i32, i32, i32) {
    %c0_i32 = arith.constant 0 : i32
    %c0_i32_0 = arith.constant 0 : i32
    %c0_i32_1 = arith.constant 0 : i32
    return %arg1, %c0_i32, %c0_i32_0 : i32, i32, i32
  }
  func.func @transform_3(%arg0: i32, %arg1: i32) -> (i32, i32, i32) {
    %c0_i32 = arith.constant 0 : i32
    %c0_i32_0 = arith.constant 0 : i32
    %c0_i32_1 = arith.constant 0 : i32
    return %arg1, %c0_i32, %c0_i32_0 : i32, i32, i32
  }
  func.func @transform_4(%arg0: i32, %arg1: i32) -> (i32, i32, i32) {
    %c0_i32 = arith.constant 0 : i32
    %c0_i32_0 = arith.constant 0 : i32
    %c0_i32_1 = arith.constant 0 : i32
    return %arg1, %c0_i32, %c0_i32_0 : i32, i32, i32
  }
  func.func @transform_5(%arg0: i32, %arg1: i32) -> (i32, i32, i32) {
    %c0_i32 = arith.constant 0 : i32
    %c0_i32_0 = arith.constant 0 : i32
    %c0_i32_1 = arith.constant 0 : i32
    return %arg1, %c0_i32, %c0_i32_0 : i32, i32, i32
  }
  func.func @transform_6(%arg0: i32, %arg1: i32) -> (i32, i32, i32) {
    %c0_i32 = arith.constant 0 : i32
    %c0_i32_0 = arith.constant 0 : i32
    %c0_i32_1 = arith.constant 0 : i32
    return %arg1, %c0_i32, %c0_i32_0 : i32, i32, i32
  }
  func.func @transform_7(%arg0: i32, %arg1: i32) -> (i32, i32, i32) {
    %c0_i32 = arith.constant 0 : i32
    %c0_i32_0 = arith.constant 0 : i32
    %c0_i32_1 = arith.constant 0 : i32
    return %arg1, %c0_i32, %c0_i32_0 : i32, i32, i32
  }
  func.func @transform_8(%arg0: i32, %arg1: i32) -> (i32, i32) {
    %c0_i32 = arith.constant 0 : i32
    %c0_i32_0 = arith.constant 0 : i32
    %c0_i32_1 = arith.constant 0 : i32
    return %c0_i32, %c0_i32_0 : i32, i32
  }
  func.func @transform_9(%arg0: i32, %arg1: i32) -> (i32, i32) {
    %c0_i32 = arith.constant 0 : i32
    %c0_i32_0 = arith.constant 0 : i32
    %c0_i32_1 = arith.constant 0 : i32
    return %c0_i32, %c0_i32_0 : i32, i32
  }
  func.func @transform_10(%arg0: i32, %arg1: i32) -> (i32, i32, i32) {
    %c0_i32 = arith.constant 0 : i32
    %c0_i32_0 = arith.constant 0 : i32
    %c0_i32_1 = arith.constant 0 : i32
    return %arg0, %c0_i32, %c0_i32_0 : i32, i32, i32
  }
}

</mosaic_0001>

<llo_original>
// kernel: tpu_custom_call.1
$region0: #{tpu_custom_call.1}
  #allocation0 [shape = 'u32[]', space=smem, size = 0x4, offset = 0x4, fixed_abs, tag = 'smem constant byte address 0x4 - core index']
  #allocation1 [shape = 'u32[144,128]{1,0:T(1,128)}', space=vmem, size = 0x12000, scoped, tag = 'internal scratch']
  %s0 = inlined_call_operand.vmem [shape: f32[2,8,32], index: 0, kind: input, shape index: {}]
  %s1 = inlined_call_operand.vmem [shape: f32[2,10,128], index: 1, kind: input, shape index: {}]
  %s2 = inlined_call_operand.vmem [shape: f32[2,32,128], index: 2, kind: input, shape index: {}]
  %s3 = inlined_call_operand.vmem [shape: f32[2,32,128], index: 3, kind: input, shape index: {}]
  %s4 = inlined_call_operand.vmem [shape: f32[2,32,128], index: 4, kind: input, shape index: {}]
  %s5 = inlined_call_operand.vmem [shape: f32[2,128,32], index: 5, kind: input, shape index: {}]
  %s6 = inlined_call_operand.vmem [shape: f32[2,32,64], index: 6, kind: input, shape index: {}]
  %s7 = inlined_call_operand.vmem [shape: f32[2,64,32], index: 7, kind: input, shape index: {}]
  %s8 = inlined_call_operand.vmem [shape: f32[128,4], index: 8, kind: input, shape index: {}]
  %s9 = inlined_call_operand.vmem [shape: f32[4,128], index: 9, kind: input, shape index: {}]
  %s10 = inlined_call_operand.hbm [shape: f32[2,8,32], index: 10, kind: output, shape index: {}]
  %s11 = sld [smem:[#allocation0]]
  $region77: #{tpu_custom_call.1} parent=0
    _
  %s13 = ssub.s32 1, %s11
  %s14 = scalar_select 0, %s13, %s11
  $region1: #{tpu_custom_call.1} parent=0
    #allocation2 [shape = 'u8[8192]{0}', space=vmem, size = 0x2000, scoped, tag = 'output window, operand 0']
    #allocation3 [shape = 's32[2]{0}', space=sflag, size = 0x8, scoped, tag = 'scoped memory for tpu_custom_call.1']
    %15 = vsyncpa [#allocation3], 0
    %s16 = scalar_lea.sflag [#allocation3], 1
    %17 = vsyncpa %s16, 0
    loop: start=0, step=1, limit=6
    $region2: #{tpu_custom_call.1} parent=1 // loop_pre_header
      _
    $region3: #{tpu_custom_call.1} parent=1 // loop_header
      %s19 = sphi 0, %s23
      %p20 = scmp.ge.s32.totalorder %s19, 6
      %s26 = sphi 0, %s38
      %s27 = sphi 0, %s34
      %s28 = sphi 0, %s26
      %s29 = sphi 0, %s27
      %s30 = sphi 0, %s28
      %s31 = sphi 0, %s29
      %s41 = sphi 0, %s43
      %s44 = sphi 0, %s41
      %s45 = sphi 0, %s44
      %s61 = sphi 0, %s45
      %s67 = sphi 0, %s69
      %s70 = sphi 0, %s67
      %s71 = sphi 0, %s70
      %s87 = sphi 0, %s71
      %s93 = sphi 0, %s95
      %s96 = sphi 0, %s93
      %s97 = sphi 0, %s96
      %s113 = sphi 0, %s97
      %s119 = sphi 0, %s121
      %s122 = sphi 0, %s119
      %s123 = sphi 0, %s122
      %s139 = sphi 0, %s123
      %s145 = sphi 0, %s147
      %s148 = sphi 0, %s145
      %s149 = sphi 0, %s148
      %s165 = sphi 0, %s149
      %s171 = sphi 0, %s173
      %s174 = sphi 0, %s171
      %s175 = sphi 0, %s174
      %s191 = sphi 0, %s175
      %s197 = sphi 0, %s199
      %s200 = sphi 0, %s197
      %s201 = sphi 0, %s200
      %s217 = sphi 0, %s201
      %s223 = sphi 0, %s225
      %s226 = sphi 0, %s223
      %s227 = sphi 0, %s226
      %s243 = sphi 0, %s227
      %s247 = sphi 0, %s247
      %s249 = sphi 0, %s247
      %s250 = sphi 0, %s249
      %s264 = sphi 0, %s250
      %s268 = sphi 0, %s268
      %s270 = sphi 0, %s268
      %s271 = sphi 0, %s270
      %s285 = sphi 0, %s271
      %s291 = sphi 0, %s293
      %s294 = sphi 0, %s291
      %s295 = sphi 0, %s294
      %s311 = sphi 0, %s295
    $region4: #{tpu_custom_call.1} parent=1 // loop_header_branch
      %22 = sbr.rel (%p20) target = $region8
    $region5: #{tpu_custom_call.1} parent=1 // loop_body
      %s24 = ssub.s32 %s19, 1
      %s25 = ssub.s32 %s19, 2
      %s32 = sadd.s32 1, %s27
      %p33 = scmp.ge.s32.totalorder %s32, 2
      %s34 = scalar_select %p33, 0, %s32
      %s35 = sadd.s32 1, %s26
      %s36 = scalar_select %p33, %s35, %s26
      %p37 = scmp.ge.s32.totalorder %s36, 2
      %s38 = scalar_select %p37, 0, %s36
      %s39 = ssub.s32 %s26, %s38
      %p40 = scmp.eq.s32.totalorder %s39, 0
      %s42 = sadd.s32 %s41, 1
      %s43 = scalar_select %p40, %s41, %s42
      %p46 = pneg %p40
      %p47 = scmp.eq.s32.totalorder %s19, 3
      %p48 = por %p46, %p47
      %p49 = scmp.ne.s32.totalorder %s41, %s44
      %p50 = scmp.eq.s32.totalorder %s19, 0
      %p51 = por %p49, %p50
      %p52 = scmp.ne.s32.totalorder %s41, %s44
      %p53 = scmp.eq.s32.totalorder %s24, 3
      %p54 = por %p52, %p53
      %p55 = scmp.ne.s32.totalorder %s44, %s45
      %p56 = scmp.eq.s32.totalorder %s24, 0
      %p57 = por %p55, %p56
      %p58 = scmp.ne.s32.totalorder %s44, %s45
      %p59 = scmp.eq.s32.totalorder %s25, 3
      %p60 = por %p58, %p59
      %p62 = scmp.ne.s32.totalorder %s45, %s61
      %p63 = scmp.eq.s32.totalorder %s25, 0
      %p64 = por %p62, %p63
      %s65 = ssub.s32 %s27, %s34
      %p66 = scmp.eq.s32.totalorder %s65, 0
      %s68 = sadd.s32 %s67, 1
      %s69 = scalar_select %p66, %s67, %s68
      %p72 = pneg %p66
      %p73 = scmp.eq.s32.totalorder %s19, 3
      %p74 = por %p72, %p73
      %p75 = scmp.ne.s32.totalorder %s67, %s70
      %p76 = scmp.eq.s32.totalorder %s19, 0
      %p77 = por %p75, %p76
      %p78 = scmp.ne.s32.totalorder %s67, %s70
      %p79 = scmp.eq.s32.totalorder %s24, 3
      %p80 = por %p78, %p79
      %p81 = scmp.ne.s32.totalorder %s70, %s71
      %p82 = scmp.eq.s32.totalorder %s24, 0
      %p83 = por %p81, %p82
      %p84 = scmp.ne.s32.totalorder %s70, %s71
      %p85 = scmp.eq.s32.totalorder %s25, 3
      %p86 = por %p84, %p85
      %p88 = scmp.ne.s32.totalorder %s71, %s87
      %p89 = scmp.eq.s32.totalorder %s25, 0
      %p90 = por %p88, %p89
      %s91 = ssub.s32 %s27, %s34
      %p92 = scmp.eq.s32.totalorder %s91, 0
      %s94 = sadd.s32 %s93, 1
      %s95 = scalar_select %p92, %s93, %s94
      %p98 = pneg %p92
      %p99 = scmp.eq.s32.totalorder %s19, 3
      %p100 = por %p98, %p99
      %p101 = scmp.ne.s32.totalorder %s93, %s96
      %p102 = scmp.eq.s32.totalorder %s19, 0
      %p103 = por %p101, %p102
      %p104 = scmp.ne.s32.totalorder %s93, %s96
      %p105 = scmp.eq.s32.totalorder %s24, 3
      %p106 = por %p104, %p105
      %p107 = scmp.ne.s32.totalorder %s96, %s97
      %p108 = scmp.eq.s32.totalorder %s24, 0
      %p109 = por %p107, %p108
      %p110 = scmp.ne.s32.totalorder %s96, %s97
      %p111 = scmp.eq.s32.totalorder %s25, 3
      %p112 = por %p110, %p111
      %p114 = scmp.ne.s32.totalorder %s97, %s113
      %p115 = scmp.eq.s32.totalorder %s25, 0
      %p116 = por %p114, %p115
      %s117 = ssub.s32 %s27, %s34
      %p118 = scmp.eq.s32.totalorder %s117, 0
      %s120 = sadd.s32 %s119, 1
      %s121 = scalar_select %p118, %s119, %s120
      %p124 = pneg %p118
      %p125 = scmp.eq.s32.totalorder %s19, 3
      %p126 = por %p124, %p125
      %p127 = scmp.ne.s32.totalorder %s119, %s122
      %p128 = scmp.eq.s32.totalorder %s19, 0
      %p129 = por %p127, %p128
      %p130 = scmp.ne.s32.totalorder %s119, %s122
      %p131 = scmp.eq.s32.totalorder %s24, 3
      %p132 = por %p130, %p131
      %p133 = scmp.ne.s32.totalorder %s122, %s123
      %p134 = scmp.eq.s32.totalorder %s24, 0
      %p135 = por %p133, %p134
      %p136 = scmp.ne.s32.totalorder %s122, %s123
      %p137 = scmp.eq.s32.totalorder %s25, 3
      %p138 = por %p136, %p137
      %p140 = scmp.ne.s32.totalorder %s123, %s139
      %p141 = scmp.eq.s32.totalorder %s25, 0
      %p142 = por %p140, %p141
      %s143 = ssub.s32 %s27, %s34
      %p144 = scmp.eq.s32.totalorder %s143, 0
      %s146 = sadd.s32 %s145, 1
      %s147 = scalar_select %p144, %s145, %s146
      %p150 = pneg %p144
      %p151 = scmp.eq.s32.totalorder %s19, 3
      %p152 = por %p150, %p151
      %p153 = scmp.ne.s32.totalorder %s145, %s148
      %p154 = scmp.eq.s32.totalorder %s19, 0
      %p155 = por %p153, %p154
      %p156 = scmp.ne.s32.totalorder %s145, %s148
      %p157 = scmp.eq.s32.totalorder %s24, 3
      %p158 = por %p156, %p157
      %p159 = scmp.ne.s32.totalorder %s148, %s149
      %p160 = scmp.eq.s32.totalorder %s24, 0
      %p161 = por %p159, %p160
      %p162 = scmp.ne.s32.totalorder %s148, %s149
      %p163 = scmp.eq.s32.totalorder %s25, 3
      %p164 = por %p162, %p163
      %p166 = scmp.ne.s32.totalorder %s149, %s165
      %p167 = scmp.eq.s32.totalorder %s25, 0
      %p168 = por %p166, %p167
      %s169 = ssub.s32 %s27, %s34
      %p170 = scmp.eq.s32.totalorder %s169, 0
      %s172 = sadd.s32 %s171, 1
      %s173 = scalar_select %p170, %s171, %s172
      %p176 = pneg %p170
      %p177 = scmp.eq.s32.totalorder %s19, 3
      %p178 = por %p176, %p177
      %p179 = scmp.ne.s32.totalorder %s171, %s174
      %p180 = scmp.eq.s32.totalorder %s19, 0
      %p181 = por %p179, %p180
      %p182 = scmp.ne.s32.totalorder %s171, %s174
      %p183 = scmp.eq.s32.totalorder %s24, 3
      %p184 = por %p182, %p183
      %p185 = scmp.ne.s32.totalorder %s174, %s175
      %p186 = scmp.eq.s32.totalorder %s24, 0
      %p187 = por %p185, %p186
      %p188 = scmp.ne.s32.totalorder %s174, %s175
      %p189 = scmp.eq.s32.totalorder %s25, 3
      %p190 = por %p188, %p189
      %p192 = scmp.ne.s32.totalorder %s175, %s191
      %p193 = scmp.eq.s32.totalorder %s25, 0
      %p194 = por %p192, %p193
      %s195 = ssub.s32 %s27, %s34
      %p196 = scmp.eq.s32.totalorder %s195, 0
      %s198 = sadd.s32 %s197, 1
      %s199 = scalar_select %p196, %s197, %s198
      %p202 = pneg %p196
      %p203 = scmp.eq.s32.totalorder %s19, 3
      %p204 = por %p202, %p203
      %p205 = scmp.ne.s32.totalorder %s197, %s200
      %p206 = scmp.eq.s32.totalorder %s19, 0
      %p207 = por %p205, %p206
      %p208 = scmp.ne.s32.totalorder %s197, %s200
      %p209 = scmp.eq.s32.totalorder %s24, 3
      %p210 = por %p208, %p209
      %p211 = scmp.ne.s32.totalorder %s200, %s201
      %p212 = scmp.eq.s32.totalorder %s24, 0
      %p213 = por %p211, %p212
      %p214 = scmp.ne.s32.totalorder %s200, %s201
      %p215 = scmp.eq.s32.totalorder %s25, 3
      %p216 = por %p214, %p215
      %p218 = scmp.ne.s32.totalorder %s201, %s217
      %p219 = scmp.eq.s32.totalorder %s25, 0
      %p220 = por %p218, %p219
      %s221 = ssub.s32 %s27, %s34
      %p222 = scmp.eq.s32.totalorder %s221, 0
      %s224 = sadd.s32 %s223, 1
      %s225 = scalar_select %p222, %s223, %s224
      %p228 = pneg %p222
      %p229 = scmp.eq.s32.totalorder %s19, 3
      %p230 = por %p228, %p229
      %p231 = scmp.ne.s32.totalorder %s223, %s226
      %p232 = scmp.eq.s32.totalorder %s19, 0
      %p233 = por %p231, %p232
      %p234 = scmp.ne.s32.totalorder %s223, %s226
      %p235 = scmp.eq.s32.totalorder %s24, 3
      %p236 = por %p234, %p235
      %p237 = scmp.ne.s32.totalorder %s226, %s227
      %p238 = scmp.eq.s32.totalorder %s24, 0
      %p239 = por %p237, %p238
      %p240 = scmp.ne.s32.totalorder %s226, %s227
      %p241 = scmp.eq.s32.totalorder %s25, 3
      %p242 = por %p240, %p241
      %p244 = scmp.ne.s32.totalorder %s227, %s243
      %p245 = scmp.eq.s32.totalorder %s25, 0
      %p246 = por %p244, %p245
      %s248 = sadd.s32 %s247, 1
      %p251 = scmp.eq.s32.totalorder %s19, 3
      %p252 = scmp.ne.s32.totalorder %s247, %s249
      %p253 = scmp.eq.s32.totalorder %s19, 0
      %p254 = por %p252, %p253
      %p255 = scmp.ne.s32.totalorder %s247, %s249
      %p256 = scmp.eq.s32.totalorder %s24, 3
      %p257 = por %p255, %p256
      %p258 = scmp.ne.s32.totalorder %s249, %s250
      %p259 = scmp.eq.s32.totalorder %s24, 0
      %p260 = por %p258, %p259
      %p261 = scmp.ne.s32.totalorder %s249, %s250
      %p262 = scmp.eq.s32.totalorder %s25, 3
      %p263 = por %p261, %p262
      %p265 = scmp.ne.s32.totalorder %s250, %s264
      %p266 = scmp.eq.s32.totalorder %s25, 0
      %p267 = por %p265, %p266
      %s269 = sadd.s32 %s268, 1
      %p272 = scmp.eq.s32.totalorder %s19, 3
      %p273 = scmp.ne.s32.totalorder %s268, %s270
      %p274 = scmp.eq.s32.totalorder %s19, 0
      %p275 = por %p273, %p274
      %p276 = scmp.ne.s32.totalorder %s268, %s270
      %p277 = scmp.eq.s32.totalorder %s24, 3
      %p278 = por %p276, %p277
      %p279 = scmp.ne.s32.totalorder %s270, %s271
      %p280 = scmp.eq.s32.totalorder %s24, 0
      %p281 = por %p279, %p280
      %p282 = scmp.ne.s32.totalorder %s270, %s271
      %p283 = scmp.eq.s32.totalorder %s25, 3
      %p284 = por %p282, %p283
      %p286 = scmp.ne.s32.totalorder %s271, %s285
      %p287 = scmp.eq.s32.totalorder %s25, 0
      %p288 = por %p286, %p287
      %s289 = ssub.s32 %s26, %s38
      %p290 = scmp.eq.s32.totalorder %s289, 0
      %s292 = sadd.s32 %s291, 1
      %s293 = scalar_select %p290, %s291, %s292
      %p296 = pneg %p290
      %p297 = scmp.eq.s32.totalorder %s19, 3
      %p298 = por %p296, %p297
      %p299 = scmp.ne.s32.totalorder %s291, %s294
      %p300 = scmp.eq.s32.totalorder %s19, 0
      %p301 = por %p299, %p300
      %p302 = scmp.ne.s32.totalorder %s291, %s294
      %p303 = scmp.eq.s32.totalorder %s24, 3
      %p304 = por %p302, %p303
      %p305 = scmp.ne.s32.totalorder %s294, %s295
      %p306 = scmp.eq.s32.totalorder %s24, 0
      %p307 = por %p305, %p306
      %p308 = scmp.ne.s32.totalorder %s294, %s295
      %p309 = scmp.eq.s32.totalorder %s25, 3
      %p310 = por %p308, %p309
      %p312 = scmp.ne.s32.totalorder %s295, %s311
      %p313 = scmp.eq.s32.totalorder %s25, 0
      %p314 = por %p312, %p313
      %p315 = scmp.le.s32.totalorder 1, %s19
      %p316 = scmp.lt.s32.totalorder %s19, 5
      %p317 = pnand %p315, %p316
      %p318 = pneg %p317
      // Predicated region
      $region9: #{tpu_custom_call.1} parent=5 // pred_check
        _
      $region10: #{tpu_custom_call.1} parent=5 // pred_check_branch
        %320 = sbr.rel (%p317) target = $region12
      $region11: #{tpu_custom_call.1} parent=5 // pred_region
        %s321 = ssub.s32 %s19, 1
        // Predicated region
        $region13: #{tpu_custom_call.1} parent=11 // pred_check
          %p322 = pneg %p260
        $region14: #{tpu_custom_call.1} parent=11 // pred_check_branch
          %324 = sbr.rel (%p322) target = $region16
        $region15: #{tpu_custom_call.1} parent=11 // pred_region
          _
        $region16: #{tpu_custom_call.1} parent=11 // pred_fallthru
          _
        // Predicated region
        $region17: #{tpu_custom_call.1} parent=11 // pred_check
          %p325 = pneg %p281
        $region18: #{tpu_custom_call.1} parent=11 // pred_check_branch
          %327 = sbr.rel (%p325) target = $region20
        $region19: #{tpu_custom_call.1} parent=11 // pred_region
          _
        $region20: #{tpu_custom_call.1} parent=11 // pred_fallthru
          _
      $region12: #{tpu_custom_call.1} parent=5 // pred_fallthru
        _
      %p328 = scmp.lt.s32.totalorder %s19, 4
      // Predicated region
      $region21: #{tpu_custom_call.1} parent=5 // pred_check
        %p329 = pneg %p328
      $region22: #{tpu_custom_call.1} parent=5 // pred_check_branch
        %331 = sbr.rel (%p329) target = $region24
      $region23: #{tpu_custom_call.1} parent=5 // pred_region
        // Predicated region
        $region25: #{tpu_custom_call.1} parent=23 // pred_check
          %p332 = pneg %p51
        $region26: #{tpu_custom_call.1} parent=23 // pred_check_branch
          %334 = sbr.rel (%p332) target = $region28
        $region27: #{tpu_custom_call.1} parent=23 // pred_region
          %p335 = scmp.lt.s32.totalorder %s26, 1
          %s336 = scalar_select %p335, %s26, 1
          %s337 = smul.addr %s336, 8
          %s338 = scalar_lea.vmem %s0, %s337
        $region28: #{tpu_custom_call.1} parent=23 // pred_fallthru
          _
        // Predicated region
        $region29: #{tpu_custom_call.1} parent=23 // pred_check
          %p339 = pneg %p77
        $region30: #{tpu_custom_call.1} parent=23 // pred_check_branch
          %341 = sbr.rel (%p339) target = $region32
        $region31: #{tpu_custom_call.1} parent=23 // pred_region
          %p342 = scmp.lt.s32.totalorder %s27, 1
          %s343 = scalar_select %p342, %s27, 1
          %s344 = smul.addr %s343, 2
          %s345 = smul.addr %s344, 8
          %s346 = scalar_lea.vmem %s1, %s345
        $region32: #{tpu_custom_call.1} parent=23 // pred_fallthru
          _
        // Predicated region
        $region33: #{tpu_custom_call.1} parent=23 // pred_check
          %p347 = pneg %p103
        $region34: #{tpu_custom_call.1} parent=23 // pred_check_branch
          %349 = sbr.rel (%p347) target = $region36
        $region35: #{tpu_custom_call.1} parent=23 // pred_region
          %p350 = scmp.lt.s32.totalorder %s27, 1
          %s351 = scalar_select %p350, %s27, 1
          %s352 = smul.addr %s351, 4
          %s353 = smul.addr %s352, 8
          %s354 = scalar_lea.vmem %s2, %s353
        $region36: #{tpu_custom_call.1} parent=23 // pred_fallthru
          _
        // Predicated region
        $region37: #{tpu_custom_call.1} parent=23 // pred_check
          %p355 = pneg %p129
        $region38: #{tpu_custom_call.1} parent=23 // pred_check_branch
          %357 = sbr.rel (%p355) target = $region40
        $region39: #{tpu_custom_call.1} parent=23 // pred_region
          %p358 = scmp.lt.s32.totalorder %s27, 1
          %s359 = scalar_select %p358, %s27, 1
          %s360 = smul.addr %s359, 4
          %s361 = smul.addr %s360, 8
          %s362 = scalar_lea.vmem %s3, %s361
        $region40: #{tpu_custom_call.1} parent=23 // pred_fallthru
          _
        // Predicated region
        $region41: #{tpu_custom_call.1} parent=23 // pred_check
          %p363 = pneg %p155
        $region42: #{tpu_custom_call.1} parent=23 // pred_check_branch
          %365 = sbr.rel (%p363) target = $region44
        $region43: #{tpu_custom_call.1} parent=23 // pred_region
          %p366 = scmp.lt.s32.totalorder %s27, 1
          %s367 = scalar_select %p366, %s27, 1
          %s368 = smul.addr %s367, 4
          %s369 = smul.addr %s368, 8
          %s370 = scalar_lea.vmem %s4, %s369
        $region44: #{tpu_custom_call.1} parent=23 // pred_fallthru
          _
        // Predicated region
        $region45: #{tpu_custom_call.1} parent=23 // pred_check
          %p371 = pneg %p181
        $region46: #{tpu_custom_call.1} parent=23 // pred_check_branch
          %373 = sbr.rel (%p371) target = $region48
        $region47: #{tpu_custom_call.1} parent=23 // pred_region
          %p374 = scmp.lt.s32.totalorder %s27, 1
          %s375 = scalar_select %p374, %s27, 1
          %s376 = smul.addr %s375, 16
          %s377 = smul.addr %s376, 8
          %s378 = scalar_lea.vmem %s5, %s377
        $region48: #{tpu_custom_call.1} parent=23 // pred_fallthru
          _
        // Predicated region
        $region49: #{tpu_custom_call.1} parent=23 // pred_check
          %p379 = pneg %p207
        $region50: #{tpu_custom_call.1} parent=23 // pred_check_branch
          %381 = sbr.rel (%p379) target = $region52
        $region51: #{tpu_custom_call.1} parent=23 // pred_region
          %p382 = scmp.lt.s32.totalorder %s27, 1
          %s383 = scalar_select %p382, %s27, 1
          %s384 = smul.addr %s383, 4
          %s385 = smul.addr %s384, 8
          %s386 = scalar_lea.vmem %s6, %s385
        $region52: #{tpu_custom_call.1} parent=23 // pred_fallthru
          _
        // Predicated region
        $region53: #{tpu_custom_call.1} parent=23 // pred_check
          %p387 = pneg %p233
        $region54: #{tpu_custom_call.1} parent=23 // pred_check_branch
          %389 = sbr.rel (%p387) target = $region56
        $region55: #{tpu_custom_call.1} parent=23 // pred_region
          %p390 = scmp.lt.s32.totalorder %s27, 1
          %s391 = scalar_select %p390, %s27, 1
          %s392 = smul.addr %s391, 8
          %s393 = smul.addr %s392, 8
          %s394 = scalar_lea.vmem %s7, %s393
        $region56: #{tpu_custom_call.1} parent=23 // pred_fallthru
          _
      $region24: #{tpu_custom_call.1} parent=5 // pred_fallthru
        _
      %p395 = scmp.le.s32.totalorder 1, %s19
      %p396 = scmp.lt.s32.totalorder %s19, 5
      %p397 = pnand %p395, %p396
      %p398 = pneg %p397
      // Predicated region
      $region57: #{tpu_custom_call.1} parent=5 // pred_check
        _
      $region58: #{tpu_custom_call.1} parent=5 // pred_check_branch
        %400 = sbr.rel (%p397) target = $region60
      $region59: #{tpu_custom_call.1} parent=5 // pred_region
        %s401 = ssub.s32 %s19, 1
        %p402 = scmp.lt.s32.totalorder %s28, 1
        %s403 = scalar_select %p402, %s28, 1
        %s404 = smul.addr %s403, 8
        %s405 = scalar_lea.vmem %s0, %s404
        %p406 = pneg %p57
        %p407 = pneg %p54
        %p408 = scmp.lt.s32.totalorder %s29, 1
        %s409 = scalar_select %p408, %s29, 1
        %s410 = smul.addr %s409, 2
        %s411 = smul.addr %s410, 8
        %s412 = scalar_lea.vmem %s1, %s411
        %p413 = pneg %p83
        %p414 = pneg %p80
        %p415 = scmp.lt.s32.totalorder %s29, 1
        %s416 = scalar_select %p415, %s29, 1
        %s417 = smul.addr %s416, 4
        %s418 = smul.addr %s417, 8
        %s419 = scalar_lea.vmem %s2, %s418
        %p420 = pneg %p109
        %p421 = pneg %p106
        %p422 = scmp.lt.s32.totalorder %s29, 1
        %s423 = scalar_select %p422, %s29, 1
        %s424 = smul.addr %s423, 4
        %s425 = smul.addr %s424, 8
        %s426 = scalar_lea.vmem %s3, %s425
        %p427 = pneg %p135
        %p428 = pneg %p132
        %p429 = scmp.lt.s32.totalorder %s29, 1
        %s430 = scalar_select %p429, %s29, 1
        %s431 = smul.addr %s430, 4
        %s432 = smul.addr %s431, 8
        %s433 = scalar_lea.vmem %s4, %s432
        %p434 = pneg %p161
        %p435 = pneg %p158
        %p436 = scmp.lt.s32.totalorder %s29, 1
        %s437 = scalar_select %p436, %s29, 1
        %s438 = smul.addr %s437, 16
        %s439 = smul.addr %s438, 8
        %s440 = scalar_lea.vmem %s5, %s439
        %p441 = pneg %p187
        %p442 = pneg %p184
        %p443 = scmp.lt.s32.totalorder %s29, 1
        %s444 = scalar_select %p443, %s29, 1
        %s445 = smul.addr %s444, 4
        %s446 = smul.addr %s445, 8
        %s447 = scalar_lea.vmem %s6, %s446
        %p448 = pneg %p213
        %p449 = pneg %p210
        %p450 = scmp.lt.s32.totalorder %s29, 1
        %s451 = scalar_select %p450, %s29, 1
        %s452 = smul.addr %s451, 8
        %s453 = smul.addr %s452, 8
        %s454 = scalar_lea.vmem %s7, %s453
        %p455 = pneg %p239
        %p456 = pneg %p236
        %p457 = pneg %p260
        %p458 = pneg %p257
        %p459 = pneg %p281
        %p460 = pneg %p278
        %p461 = pneg %p307
        %p462 = pneg %p304
        %s463 = sand.u32 %s294, 1
        %s464 = scalar_lea.sflag [#allocation3], %s463
        %s465 = sand.u32 %s294, 1
        %s466 = smul.addr %s465, 8
        %s467 = scalar_lea.vmem [#allocation2], %s466
        %p468 = scmp.lt.s32.totalorder %s28, 1
        %s469 = scalar_select %p468, %s28, 1
        %s470 = smul.addr %s469, 8
        %s471 = scalar_lea.vmem %s0, %s470
        %p472 = scmp.lt.s32.totalorder %s29, 1
        %s473 = scalar_select %p472, %s29, 1
        %s474 = smul.addr %s473, 2
        %s475 = smul.addr %s474, 8
        %s476 = scalar_lea.vmem %s1, %s475
        %p477 = scmp.lt.s32.totalorder %s29, 1
        %s478 = scalar_select %p477, %s29, 1
        %s479 = smul.addr %s478, 4
        %s480 = smul.addr %s479, 8
        %s481 = scalar_lea.vmem %s2, %s480
        %p482 = scmp.lt.s32.totalorder %s29, 1
        %s483 = scalar_select %p482, %s29, 1
        %s484 = smul.addr %s483, 4
        %s485 = smul.addr %s484, 8
        %s486 = scalar_lea.vmem %s3, %s485
        %p487 = scmp.lt.s32.totalorder %s29, 1
        %s488 = scalar_select %p487, %s29, 1
        %s489 = smul.addr %s488, 4
        %s490 = smul.addr %s489, 8
        %s491 = scalar_lea.vmem %s4, %s490
        %p492 = scmp.lt.s32.totalorder %s29, 1
        %s493 = scalar_select %p492, %s29, 1
        %s494 = smul.addr %s493, 16
        %s495 = smul.addr %s494, 8
        %s496 = scalar_lea.vmem %s5, %s495
        %p497 = scmp.lt.s32.totalorder %s29, 1
        %s498 = scalar_select %p497, %s29, 1
        %s499 = smul.addr %s498, 4
        %s500 = smul.addr %s499, 8
        %s501 = scalar_lea.vmem %s6, %s500
        %p502 = scmp.lt.s32.totalorder %s29, 1
        %s503 = scalar_select %p502, %s29, 1
        %s504 = smul.addr %s503, 8
        %s505 = smul.addr %s504, 8
        %s506 = scalar_lea.vmem %s7, %s505
        %p507 = scmp.eq.s32.totalorder %s29, 0
        // Predicated region
        $region61: #{tpu_custom_call.1} parent=59 // pred_check
          %p508 = pneg %p507
        $region62: #{tpu_custom_call.1} parent=59 // pred_check_branch
          %510 = sbr.rel (%p508) target = $region64
        $region63: #{tpu_custom_call.1} parent=59 // pred_region
          %v511 = vld [vmem:[%s471] sm:$0xff]
          %vm512 = vcmask 261120
          %513 = vst.msk [vmem:[%s467] sm:$0xff] %vm512, %v511
        $region64: #{tpu_custom_call.1} parent=59 // pred_fallthru
          _
        %v514 = vld [vmem:[%s467] sm:$0xff]
        %v515 = vld [vmem:[%s476] sm:$0x1]
        %v516 = vld [vmem:[%s476 + $0x1] sm:$0x1]
        %v517 = vld [vmem:[%s476 + $0x2] sm:$0x1]
        %v518 = vld [vmem:[%s476 + $0x3] sm:$0x1]
        %v519 = vld [vmem:[%s476 + $0x4] sm:$0x1]
        %v520 = vld [vmem:[%s476 + $0x5] sm:$0x1]
        %v521 = vld [vmem:[%s476 + $0x6] sm:$0x1]
        %v522 = vld [vmem:[%s476 + $0x7] sm:$0x1]
        %v523 = vld [vmem:[%s476 + $0x8] sm:$0x1]
        %v524 = vld [vmem:[%s476 + $0x9] sm:$0x1]
        %vm525 = vcmask 261120
        %v526 = vsel %vm525, %v514, 0.0
        %527 = vadd.xlane.f32.xlu0 %v526
        %v528 = vpop.xlane.xlu0 %527
        %v529 = vrcp.pop 32.0
        %v530 = vmul.f32 %v528, %v529
        %v531 = vsub.f32 %v514, %v530
        %v532 = vmul.f32 %v531, %v531
        %v533 = vsel %vm525, %v532, 0.0
        %534 = vadd.xlane.f32.xlu0 %v533
        %v535 = vpop.xlane.xlu0 %534
        %v536 = vmul.f32 %v535, %v529
        %v537 = vadd.f32 %v536, 1e-06
        %v538 = vrsqrt.pop %v537
        %v539 = vmul.f32 %v531, %v538
        %v540 = vlaneseq
        %v541 = vshrl.u32 %v540, 7
        %v542 = vsub.s32 0, %v541
        %v543 = vrot.slane %v515, %v542
        %v544 = vmul.f32 %v539, %v543
        %v545 = vlaneseq
        %v546 = vshrl.u32 %v545, 7
        %v547 = vsub.s32 0, %v546
        %v548 = vrot.slane %v516, %v547
        %v549 = vadd.f32 %v544, %v548
        %v550 = vld [vmem:[%s481] sm:$0xff]
        %v551 = vld [vmem:[%s481 + $0x8] sm:$0xff]
        %v552 = vld [vmem:[%s481 + $0x10] sm:$0xff]
        %v553 = vld [vmem:[%s481 + $0x18] sm:$0xff]
        %v555 = vsel %vm525, %v549, 0
        %557 = vmatprep.subr.mxu0 0.0
        %558 = vmatpush1.msra.mxu0 %v550
        %559 = vmatprep.subr.mxu0 0.0
        %560 = vmatpush1.msra.mxu0 %v551
        %561 = vmatprep.subr.mxu0 0.0
        %562 = vmatpush1.msra.mxu0 %v552
        %563 = vmatprep.subr.mxu0 0.0
        %564 = vmatpush1.msra.mxu0 %v553
        %565 = vmatprep.subr.mxu0 0.0
        %566 = vmatpush1.msra.mxu0 0.0
        %567 = vmatprep.subr.mxu0 0.0
        %568 = vmatpush1.msra.mxu0 0.0
        %569 = vmatprep.subr.mxu0 0.0
        %570 = vmatpush1.msra.mxu0 0.0
        %571 = vmatprep.subr.mxu0 0.0
        %572 = vmatpush1.msra.mxu0 0.0
        %573 = vmatprep.subr.mxu0 0.0
        %574 = vmatpush1.msra.mxu0 0.0
        %575 = vmatprep.subr.mxu0 0.0
        %576 = vmatpush1.msra.mxu0 0.0
        %577 = vmatprep.subr.mxu0 0.0
        %578 = vmatpush1.msra.mxu0 0.0
        %579 = vmatprep.subr.mxu0 0.0
        %580 = vmatpush1.msra.mxu0 0.0
        %581 = vmatprep.subr.mxu0 0.0
        %582 = vmatpush1.msra.mxu0 0.0
        %583 = vmatprep.subr.mxu0 0.0
        %584 = vmatpush1.msra.mxu0 0.0
        %585 = vmatprep.subr.mxu0 0.0
        %586 = vmatpush1.msra.mxu0 0.0
        %587 = vmatprep.subr.mxu0 0.0
        %588 = vmatpush1.msra.mxu0 0.0
        %589 = vmatprep.subr.mxu0 0.0
        %590 = vmatpush1.msra.mxu0 0.0
        %591 = vmatprep.subr.mxu0 0.0
        %592 = vmatpush1.msra.mxu0 0.0
        %593 = vmatprep.subr.mxu0 0.0
        %594 = vmatpush1.msra.mxu0 0.0
        %595 = vmatprep.subr.mxu0 0.0
        %596 = vmatpush1.msra.mxu0 0.0
        %597 = vmatprep.subr.mxu0 0.0
        %598 = vmatpush1.msra.mxu0 0.0
        %599 = vmatprep.subr.mxu0 0.0
        %600 = vmatpush1.msra.mxu0 0.0
        %601 = vmatprep.subr.mxu0 0.0
        %602 = vmatpush1.msra.mxu0 0.0
        %603 = vmatprep.subr.mxu0 0.0
        %604 = vmatpush1.msra.mxu0 0.0
        %605 = vmatprep.subr.mxu0 0.0
        %606 = vmatpush1.msra.mxu0 0.0
        %607 = vmatprep.subr.mxu0 0.0
        %608 = vmatpush1.msra.mxu0 0.0
        %609 = vmatprep.subr.mxu0 0.0
        %610 = vmatpush1.msra.mxu0 0.0
        %611 = vmatprep.subr.mxu0 0.0
        %612 = vmatpush1.msra.mxu0 0.0
        %613 = vmatprep.subr.mxu0 0.0
        %614 = vmatpush1.msra.mxu0 0.0
        %615 = vmatprep.subr.mxu0 0.0
        %616 = vmatpush1.msra.mxu0 0.0
        %617 = vmatprep.subr.mxu0 0.0
        %618 = vmatpush1.msra.mxu0 0.0
        %619 = vmatprep.subr.mxu0 0.0
        %620 = vmatpush1.msra.mxu0 0.0
        %621 = vmatprep.mubr.f32.mxu0 0.0
        %622 = vmatmul.mubr.f32.gmra.mrb[0].mxu0 %v555
        %v623 = vpop.f32.mrb[0].mxu0
        %v624 = vadd.f32 %v517, %v623
        %v625 = vpop.f32.mrb[0].mxu0
        %626 = vdwg.mxu0
        %v627 = vld [vmem:[%s486] sm:$0xff]
        %v628 = vld [vmem:[%s486 + $0x8] sm:$0xff]
        %v629 = vld [vmem:[%s486 + $0x10] sm:$0xff]
        %v630 = vld [vmem:[%s486 + $0x18] sm:$0xff]
        %v631 = vlaneseq
        %v632 = vshrl.u32 %v631, 7
        %v633 = vsub.s32 0, %v632
        %v634 = vrot.slane %v518, %v633
        %635 = vmatprep.subr.mxu0 0.0
        %636 = vmatpush1.msra.mxu0 %v627
        %637 = vmatprep.subr.mxu0 0.0
        %638 = vmatpush1.msra.mxu0 %v628
        %639 = vmatprep.subr.mxu0 0.0
        %640 = vmatpush1.msra.mxu0 %v629
        %641 = vmatprep.subr.mxu0 0.0
        %642 = vmatpush1.msra.mxu0 %v630
        %643 = vmatprep.subr.mxu0 0.0
        %644 = vmatpush1.msra.mxu0 0.0
        %645 = vmatprep.subr.mxu0 0.0
        %646 = vmatpush1.msra.mxu0 0.0
        %647 = vmatprep.subr.mxu0 0.0
        %648 = vmatpush1.msra.mxu0 0.0
        %649 = vmatprep.subr.mxu0 0.0
        %650 = vmatpush1.msra.mxu0 0.0
        %651 = vmatprep.subr.mxu0 0.0
        %652 = vmatpush1.msra.mxu0 0.0
        %653 = vmatprep.subr.mxu0 0.0
        %654 = vmatpush1.msra.mxu0 0.0
        %655 = vmatprep.subr.mxu0 0.0
        %656 = vmatpush1.msra.mxu0 0.0
        %657 = vmatprep.subr.mxu0 0.0
        %658 = vmatpush1.msra.mxu0 0.0
        %659 = vmatprep.subr.mxu0 0.0
        %660 = vmatpush1.msra.mxu0 0.0
        %661 = vmatprep.subr.mxu0 0.0
        %662 = vmatpush1.msra.mxu0 0.0
        %663 = vmatprep.subr.mxu0 0.0
        %664 = vmatpush1.msra.mxu0 0.0
        %665 = vmatprep.subr.mxu0 0.0
        %666 = vmatpush1.msra.mxu0 0.0
        %667 = vmatprep.subr.mxu0 0.0
        %668 = vmatpush1.msra.mxu0 0.0
        %669 = vmatprep.subr.mxu0 0.0
        %670 = vmatpush1.msra.mxu0 0.0
        %671 = vmatprep.subr.mxu0 0.0
        %672 = vmatpush1.msra.mxu0 0.0
        %673 = vmatprep.subr.mxu0 0.0
        %674 = vmatpush1.msra.mxu0 0.0
        %675 = vmatprep.subr.mxu0 0.0
        %676 = vmatpush1.msra.mxu0 0.0
        %677 = vmatprep.subr.mxu0 0.0
        %678 = vmatpush1.msra.mxu0 0.0
        %679 = vmatprep.subr.mxu0 0.0
        %680 = vmatpush1.msra.mxu0 0.0
        %681 = vmatprep.subr.mxu0 0.0
        %682 = vmatpush1.msra.mxu0 0.0
        %683 = vmatprep.subr.mxu0 0.0
        %684 = vmatpush1.msra.mxu0 0.0
        %685 = vmatprep.subr.mxu0 0.0
        %686 = vmatpush1.msra.mxu0 0.0
        %687 = vmatprep.subr.mxu0 0.0
        %688 = vmatpush1.msra.mxu0 0.0
        %689 = vmatprep.subr.mxu0 0.0
        %690 = vmatpush1.msra.mxu0 0.0
        %691 = vmatprep.subr.mxu0 0.0
        %692 = vmatpush1.msra.mxu0 0.0
        %693 = vmatprep.subr.mxu0 0.0
        %694 = vmatpush1.msra.mxu0 0.0
        %695 = vmatprep.subr.mxu0 0.0
        %696 = vmatpush1.msra.mxu0 0.0
        %697 = vmatprep.subr.mxu0 0.0
        %698 = vmatpush1.msra.mxu0 0.0
        %699 = vmatprep.mubr.f32.mxu0 0.0
        %700 = vmatmul.mubr.f32.gmra.mrb[0].mxu0 %v555
        %v701 = vpop.f32.mrb[0].mxu0
        %v702 = vadd.f32 %v634, %v701
        %v703 = vpop.f32.mrb[0].mxu0
        %704 = vdwg.mxu0
        %v705 = vld [vmem:[%s491] sm:$0xff]
        %v706 = vld [vmem:[%s491 + $0x8] sm:$0xff]
        %v707 = vld [vmem:[%s491 + $0x10] sm:$0xff]
        %v708 = vld [vmem:[%s491 + $0x18] sm:$0xff]
        %v709 = vlaneseq
        %v710 = vshrl.u32 %v709, 7
        %v711 = vsub.s32 0, %v710
        %v712 = vrot.slane %v519, %v711
        %713 = vmatprep.subr.mxu0 0.0
        %714 = vmatpush1.msra.mxu0 %v705
        %715 = vmatprep.subr.mxu0 0.0
        %716 = vmatpush1.msra.mxu0 %v706
        %717 = vmatprep.subr.mxu0 0.0
        %718 = vmatpush1.msra.mxu0 %v707
        %719 = vmatprep.subr.mxu0 0.0
        %720 = vmatpush1.msra.mxu0 %v708
        %721 = vmatprep.subr.mxu0 0.0
        %722 = vmatpush1.msra.mxu0 0.0
        %723 = vmatprep.subr.mxu0 0.0
        %724 = vmatpush1.msra.mxu0 0.0
        %725 = vmatprep.subr.mxu0 0.0
        %726 = vmatpush1.msra.mxu0 0.0
        %727 = vmatprep.subr.mxu0 0.0
        %728 = vmatpush1.msra.mxu0 0.0
        %729 = vmatprep.subr.mxu0 0.0
        %730 = vmatpush1.msra.mxu0 0.0
        %731 = vmatprep.subr.mxu0 0.0
        %732 = vmatpush1.msra.mxu0 0.0
        %733 = vmatprep.subr.mxu0 0.0
        %734 = vmatpush1.msra.mxu0 0.0
        %735 = vmatprep.subr.mxu0 0.0
        %736 = vmatpush1.msra.mxu0 0.0
        %737 = vmatprep.subr.mxu0 0.0
        %738 = vmatpush1.msra.mxu0 0.0
        %739 = vmatprep.subr.mxu0 0.0
        %740 = vmatpush1.msra.mxu0 0.0
        %741 = vmatprep.subr.mxu0 0.0
        %742 = vmatpush1.msra.mxu0 0.0
        %743 = vmatprep.subr.mxu0 0.0
        %744 = vmatpush1.msra.mxu0 0.0
        %745 = vmatprep.subr.mxu0 0.0
        %746 = vmatpush1.msra.mxu0 0.0
        %747 = vmatprep.subr.mxu0 0.0
        %748 = vmatpush1.msra.mxu0 0.0
        %749 = vmatprep.subr.mxu0 0.0
        %750 = vmatpush1.msra.mxu0 0.0
        %751 = vmatprep.subr.mxu0 0.0
        %752 = vmatpush1.msra.mxu0 0.0
        %753 = vmatprep.subr.mxu0 0.0
        %754 = vmatpush1.msra.mxu0 0.0
        %755 = vmatprep.subr.mxu0 0.0
        %756 = vmatpush1.msra.mxu0 0.0
        %757 = vmatprep.subr.mxu0 0.0
        %758 = vmatpush1.msra.mxu0 0.0
        %759 = vmatprep.subr.mxu0 0.0
        %760 = vmatpush1.msra.mxu0 0.0
        %761 = vmatprep.subr.mxu0 0.0
        %762 = vmatpush1.msra.mxu0 0.0
        %763 = vmatprep.subr.mxu0 0.0
        %764 = vmatpush1.msra.mxu0 0.0
        %765 = vmatprep.subr.mxu0 0.0
        %766 = vmatpush1.msra.mxu0 0.0
        %767 = vmatprep.subr.mxu0 0.0
        %768 = vmatpush1.msra.mxu0 0.0
        %769 = vmatprep.subr.mxu0 0.0
        %770 = vmatpush1.msra.mxu0 0.0
        %771 = vmatprep.subr.mxu0 0.0
        %772 = vmatpush1.msra.mxu0 0.0
        %773 = vmatprep.subr.mxu0 0.0
        %774 = vmatpush1.msra.mxu0 0.0
        %775 = vmatprep.subr.mxu0 0.0
        %776 = vmatpush1.msra.mxu0 0.0
        %777 = vmatprep.mubr.f32.mxu0 0.0
        %778 = vmatmul.mubr.f32.gmra.mrb[0].mxu0 %v555
        %v779 = vpop.f32.mrb[0].mxu0
        %v780 = vadd.f32 %v712, %v779
        %v781 = vpop.f32.mrb[0].mxu0
        %782 = vdwg.mxu0
        %v783 = vlaneseq
        %v784 = vshrl.u32 %v783, 7
        %v785 = vsub.s32 0, %v784
        %v786 = vrot.slane %v624, %v785
        %v787 = vmul.f32 %v786, %v702
        %v788 = vld [vmem:[%s8] sm:$0xff]
        %v789 = vld [vmem:[%s8 + $0x8] sm:$0xff]
        %v790 = vld [vmem:[%s8 + $0x10] sm:$0xff]
        %v791 = vld [vmem:[%s8 + $0x18] sm:$0xff]
        %v792 = vld [vmem:[%s8 + $0x20] sm:$0xff]
        %v793 = vld [vmem:[%s8 + $0x28] sm:$0xff]
        %v794 = vld [vmem:[%s8 + $0x30] sm:$0xff]
        %v795 = vld [vmem:[%s8 + $0x38] sm:$0xff]
        %v796 = vld [vmem:[%s8 + $0x40] sm:$0xff]
        %v797 = vld [vmem:[%s8 + $0x48] sm:$0xff]
        %v798 = vld [vmem:[%s8 + $0x50] sm:$0xff]
        %v799 = vld [vmem:[%s8 + $0x58] sm:$0xff]
        %v800 = vld [vmem:[%s8 + $0x60] sm:$0xff]
        %v801 = vld [vmem:[%s8 + $0x68] sm:$0xff]
        %v802 = vld [vmem:[%s8 + $0x70] sm:$0xff]
        %v803 = vld [vmem:[%s8 + $0x78] sm:$0xff]
        %804 = vmatprep.subr.mxu0 0.0
        %805 = vmatpush1.msra.mxu0 %v788
        %806 = vmatprep.subr.mxu0 0.0
        %807 = vmatpush1.msra.mxu0 %v789
        %808 = vmatprep.subr.mxu0 0.0
        %809 = vmatpush1.msra.mxu0 %v790
        %810 = vmatprep.subr.mxu0 0.0
        %811 = vmatpush1.msra.mxu0 %v791
        %812 = vmatprep.subr.mxu0 0.0
        %813 = vmatpush1.msra.mxu0 %v792
        %814 = vmatprep.subr.mxu0 0.0
        %815 = vmatpush1.msra.mxu0 %v793
        %816 = vmatprep.subr.mxu0 0.0
        %817 = vmatpush1.msra.mxu0 %v794
        %818 = vmatprep.subr.mxu0 0.0
        %819 = vmatpush1.msra.mxu0 %v795
        %820 = vmatprep.subr.mxu0 0.0
        %821 = vmatpush1.msra.mxu0 %v796
        %822 = vmatprep.subr.mxu0 0.0
        %823 = vmatpush1.msra.mxu0 %v797
        %824 = vmatprep.subr.mxu0 0.0
        %825 = vmatpush1.msra.mxu0 %v798
        %826 = vmatprep.subr.mxu0 0.0
        %827 = vmatpush1.msra.mxu0 %v799
        %828 = vmatprep.subr.mxu0 0.0
        %829 = vmatpush1.msra.mxu0 %v800
        %830 = vmatprep.subr.mxu0 0.0
        %831 = vmatpush1.msra.mxu0 %v801
        %832 = vmatprep.subr.mxu0 0.0
        %833 = vmatpush1.msra.mxu0 %v802
        %834 = vmatprep.subr.mxu0 0.0
        %835 = vmatpush1.msra.mxu0 %v803
        %836 = vmatprep.subr.mxu0 0.0
        %837 = vmatpush1.msra.mxu0 0.0
        %838 = vmatprep.subr.mxu0 0.0
        %839 = vmatpush1.msra.mxu0 0.0
        %840 = vmatprep.subr.mxu0 0.0
        %841 = vmatpush1.msra.mxu0 0.0
        %842 = vmatprep.subr.mxu0 0.0
        %843 = vmatpush1.msra.mxu0 0.0
        %844 = vmatprep.subr.mxu0 0.0
        %845 = vmatpush1.msra.mxu0 0.0
        %846 = vmatprep.subr.mxu0 0.0
        %847 = vmatpush1.msra.mxu0 0.0
        %848 = vmatprep.subr.mxu0 0.0
        %849 = vmatpush1.msra.mxu0 0.0
        %850 = vmatprep.subr.mxu0 0.0
        %851 = vmatpush1.msra.mxu0 0.0
        %852 = vmatprep.subr.mxu0 0.0
        %853 = vmatpush1.msra.mxu0 0.0
        %854 = vmatprep.subr.mxu0 0.0
        %855 = vmatpush1.msra.mxu0 0.0
        %856 = vmatprep.subr.mxu0 0.0
        %857 = vmatpush1.msra.mxu0 0.0
        %858 = vmatprep.subr.mxu0 0.0
        %859 = vmatpush1.msra.mxu0 0.0
        %860 = vmatprep.subr.mxu0 0.0
        %861 = vmatpush1.msra.mxu0 0.0
        %862 = vmatprep.subr.mxu0 0.0
        %863 = vmatpush1.msra.mxu0 0.0
        %864 = vmatprep.subr.mxu0 0.0
        %865 = vmatpush1.msra.mxu0 0.0
        %866 = vmatprep.subr.mxu0 0.0
        %867 = vmatpush1.msra.mxu0 0.0
        %868 = vmatprep.mubr.f32.mxu0 0.0
        %869 = vmatmul.mubr.f32.gmra.mrb[0].mxu0 %v787
        %v870 = vpop.f32.mrb[0].mxu0
        %v871 = vadd.f32 0.0, %v870
        %v872 = vpop.f32.mrb[0].mxu0
        %873 = vdwg.mxu0
        %v874 = vmul.f32 %v871, 0.17677669
        %vm875 = vcmask 31744
        %v876 = vsel %vm875, %v874, -inf
        %v877 = vrot.slane %v876, 4
        %v878 = vmax.f32 %v876, %v877
        %v879 = vrot.slane %v878, 2
        %v880 = vmax.f32 %v878, %v879
        %v881 = vrot.slane %v880, 1
        %v882 = vmax.f32 %v880, %v881
        %v883 = vsub.f32 %v874, %v882
        %v884 = vmul.f32 %v883, 1.442695
        %v885 = vpow.pop %v884
        %v886 = vsel %vm875, %v885, 0.0
        %v887 = vrot.slane %v886, 4
        %v888 = vadd.f32 %v886, %v887
        %v889 = vrot.slane %v888, 2
        %v890 = vadd.f32 %v888, %v889
        %v891 = vrot.slane %v890, 1
        %v892 = vadd.f32 %v890, %v891
        %v893 = vrcp.pop %v892
        %v894 = vmul.f32 %v885, %v893
        %v895 = vld [vmem:[%s9] sm:$0xf]
        %v897 = vsel %vm875, %v894, 0
        %vm899 = vcmask 1043456
        %v901 = vsel %vm899, %v895, 0
        %903 = vmatprep.subr.mxu0 0.0
        %904 = vmatpush1.msra.mxu0 %v901
        %905 = vmatprep.subr.mxu0 0.0
        %906 = vmatpush1.msra.mxu0 0.0
        %907 = vmatprep.subr.mxu0 0.0
        %908 = vmatpush1.msra.mxu0 0.0
        %909 = vmatprep.subr.mxu0 0.0
        %910 = vmatpush1.msra.mxu0 0.0
        %911 = vmatprep.subr.mxu0 0.0
        %912 = vmatpush1.msra.mxu0 0.0
        %913 = vmatprep.subr.mxu0 0.0
        %914 = vmatpush1.msra.mxu0 0.0
        %915 = vmatprep.subr.mxu0 0.0
        %916 = vmatpush1.msra.mxu0 0.0
        %917 = vmatprep.subr.mxu0 0.0
        %918 = vmatpush1.msra.mxu0 0.0
        %919 = vmatprep.subr.mxu0 0.0
        %920 = vmatpush1.msra.mxu0 0.0
        %921 = vmatprep.subr.mxu0 0.0
        %922 = vmatpush1.msra.mxu0 0.0
        %923 = vmatprep.subr.mxu0 0.0
        %924 = vmatpush1.msra.mxu0 0.0
        %925 = vmatprep.subr.mxu0 0.0
        %926 = vmatpush1.msra.mxu0 0.0
        %927 = vmatprep.subr.mxu0 0.0
        %928 = vmatpush1.msra.mxu0 0.0
        %929 = vmatprep.subr.mxu0 0.0
        %930 = vmatpush1.msra.mxu0 0.0
        %931 = vmatprep.subr.mxu0 0.0
        %932 = vmatpush1.msra.mxu0 0.0
        %933 = vmatprep.subr.mxu0 0.0
        %934 = vmatpush1.msra.mxu0 0.0
        %935 = vmatprep.subr.mxu0 0.0
        %936 = vmatpush1.msra.mxu0 0.0
        %937 = vmatprep.subr.mxu0 0.0
        %938 = vmatpush1.msra.mxu0 0.0
        %939 = vmatprep.subr.mxu0 0.0
        %940 = vmatpush1.msra.mxu0 0.0
        %941 = vmatprep.subr.mxu0 0.0
        %942 = vmatpush1.msra.mxu0 0.0
        %943 = vmatprep.subr.mxu0 0.0
        %944 = vmatpush1.msra.mxu0 0.0
        %945 = vmatprep.subr.mxu0 0.0
        %946 = vmatpush1.msra.mxu0 0.0
        %947 = vmatprep.subr.mxu0 0.0
        %948 = vmatpush1.msra.mxu0 0.0
        %949 = vmatprep.subr.mxu0 0.0
        %950 = vmatpush1.msra.mxu0 0.0
        %951 = vmatprep.subr.mxu0 0.0
        %952 = vmatpush1.msra.mxu0 0.0
        %953 = vmatprep.subr.mxu0 0.0
        %954 = vmatpush1.msra.mxu0 0.0
        %955 = vmatprep.subr.mxu0 0.0
        %956 = vmatpush1.msra.mxu0 0.0
        %957 = vmatprep.subr.mxu0 0.0
        %958 = vmatpush1.msra.mxu0 0.0
        %959 = vmatprep.subr.mxu0 0.0
        %960 = vmatpush1.msra.mxu0 0.0
        %961 = vmatprep.subr.mxu0 0.0
        %962 = vmatpush1.msra.mxu0 0.0
        %963 = vmatprep.subr.mxu0 0.0
        %964 = vmatpush1.msra.mxu0 0.0
        %965 = vmatprep.subr.mxu0 0.0
        %966 = vmatpush1.msra.mxu0 0.0
        %967 = vmatprep.mubr.f32.mxu0 0.0
        %968 = vmatmul.mubr.f32.gmra.mrb[0].mxu0 %v897
        %v969 = vpop.f32.mrb[0].mxu0
        %v970 = vadd.f32 0.0, %v969
        %v971 = vpop.f32.mrb[0].mxu0
        %972 = vdwg.mxu0
        %v973 = vmul.f32 %v970, %v780
        %v974 = vrot.slane %v973, 4
        %v975 = vadd.f32 %v973, %v974
        %v976 = vrot.slane %v975, 2
        %v977 = vadd.f32 %v975, %v976
        %v978 = vrot.slane %v977, 1
        %v979 = vadd.f32 %v977, %v978
        %v980 = vld [vmem:[%s496] sm:$0xff]
        %v981 = vld [vmem:[%s496 + $0x8] sm:$0xff]
        %v982 = vld [vmem:[%s496 + $0x10] sm:$0xff]
        %v983 = vld [vmem:[%s496 + $0x18] sm:$0xff]
        %v984 = vld [vmem:[%s496 + $0x20] sm:$0xff]
        %v985 = vld [vmem:[%s496 + $0x28] sm:$0xff]
        %v986 = vld [vmem:[%s496 + $0x30] sm:$0xff]
        %v987 = vld [vmem:[%s496 + $0x38] sm:$0xff]
        %v988 = vld [vmem:[%s496 + $0x40] sm:$0xff]
        %v989 = vld [vmem:[%s496 + $0x48] sm:$0xff]
        %v990 = vld [vmem:[%s496 + $0x50] sm:$0xff]
        %v991 = vld [vmem:[%s496 + $0x58] sm:$0xff]
        %v992 = vld [vmem:[%s496 + $0x60] sm:$0xff]
        %v993 = vld [vmem:[%s496 + $0x68] sm:$0xff]
        %v994 = vld [vmem:[%s496 + $0x70] sm:$0xff]
        %v995 = vld [vmem:[%s496 + $0x78] sm:$0xff]
        %996 = vmatprep.subr.mxu0 0.0
        %997 = vmatpush1.msra.mxu0 %v980
        %998 = vmatprep.subr.mxu0 0.0
        %999 = vmatpush1.msra.mxu0 %v981
        %1000 = vmatprep.subr.mxu0 0.0
        %1001 = vmatpush1.msra.mxu0 %v982
        %1002 = vmatprep.subr.mxu0 0.0
        %1003 = vmatpush1.msra.mxu0 %v983
        %1004 = vmatprep.subr.mxu0 0.0
        %1005 = vmatpush1.msra.mxu0 %v984
        %1006 = vmatprep.subr.mxu0 0.0
        %1007 = vmatpush1.msra.mxu0 %v985
        %1008 = vmatprep.subr.mxu0 0.0
        %1009 = vmatpush1.msra.mxu0 %v986
        %1010 = vmatprep.subr.mxu0 0.0
        %1011 = vmatpush1.msra.mxu0 %v987
        %1012 = vmatprep.subr.mxu0 0.0
        %1013 = vmatpush1.msra.mxu0 %v988
        %1014 = vmatprep.subr.mxu0 0.0
        %1015 = vmatpush1.msra.mxu0 %v989
        %1016 = vmatprep.subr.mxu0 0.0
        %1017 = vmatpush1.msra.mxu0 %v990
        %1018 = vmatprep.subr.mxu0 0.0
        %1019 = vmatpush1.msra.mxu0 %v991
        %1020 = vmatprep.subr.mxu0 0.0
        %1021 = vmatpush1.msra.mxu0 %v992
        %1022 = vmatprep.subr.mxu0 0.0
        %1023 = vmatpush1.msra.mxu0 %v993
        %1024 = vmatprep.subr.mxu0 0.0
        %1025 = vmatpush1.msra.mxu0 %v994
        %1026 = vmatprep.subr.mxu0 0.0
        %1027 = vmatpush1.msra.mxu0 %v995
        %1028 = vmatprep.subr.mxu0 0.0
        %1029 = vmatpush1.msra.mxu0 0.0
        %1030 = vmatprep.subr.mxu0 0.0
        %1031 = vmatpush1.msra.mxu0 0.0
        %1032 = vmatprep.subr.mxu0 0.0
        %1033 = vmatpush1.msra.mxu0 0.0
        %1034 = vmatprep.subr.mxu0 0.0
        %1035 = vmatpush1.msra.mxu0 0.0
        %1036 = vmatprep.subr.mxu0 0.0
        %1037 = vmatpush1.msra.mxu0 0.0
        %1038 = vmatprep.subr.mxu0 0.0
        %1039 = vmatpush1.msra.mxu0 0.0
        %1040 = vmatprep.subr.mxu0 0.0
        %1041 = vmatpush1.msra.mxu0 0.0
        %1042 = vmatprep.subr.mxu0 0.0
        %1043 = vmatpush1.msra.mxu0 0.0
        %1044 = vmatprep.subr.mxu0 0.0
        %1045 = vmatpush1.msra.mxu0 0.0
        %1046 = vmatprep.subr.mxu0 0.0
        %1047 = vmatpush1.msra.mxu0 0.0
        %1048 = vmatprep.subr.mxu0 0.0
        %1049 = vmatpush1.msra.mxu0 0.0
        %1050 = vmatprep.subr.mxu0 0.0
        %1051 = vmatpush1.msra.mxu0 0.0
        %1052 = vmatprep.subr.mxu0 0.0
        %1053 = vmatpush1.msra.mxu0 0.0
        %1054 = vmatprep.subr.mxu0 0.0
        %1055 = vmatpush1.msra.mxu0 0.0
        %1056 = vmatprep.subr.mxu0 0.0
        %1057 = vmatpush1.msra.mxu0 0.0
        %1058 = vmatprep.subr.mxu0 0.0
        %1059 = vmatpush1.msra.mxu0 0.0
        %1060 = vmatprep.mubr.f32.mxu0 0.0
        %1061 = vmatmul.mubr.f32.gmra.mrb[0].mxu0 %v979
        %v1062 = vpop.f32.mrb[0].mxu0
        %v1063 = vadd.f32 %v520, %v1062
        %v1064 = vpop.f32.mrb[0].mxu0
        %1065 = vdwg.mxu0
        %v1066 = vlaneseq
        %v1067 = vshrl.u32 %v1066, 7
        %v1068 = vsub.s32 0, %v1067
        %v1069 = vrot.slane %v1063, %v1068
        %v1070 = vadd.f32 %v514, %v1069
        %v1071 = vsel %vm525, %v1070, 0.0
        %1072 = vadd.xlane.f32.xlu0 %v1071
        %v1073 = vpop.xlane.xlu0 %1072
        %v1074 = vmul.f32 %v1073, %v529
        %v1075 = vsub.f32 %v1070, %v1074
        %v1076 = vmul.f32 %v1075, %v1075
        %v1077 = vsel %vm525, %v1076, 0.0
        %1078 = vadd.xlane.f32.xlu0 %v1077
        %v1079 = vpop.xlane.xlu0 %1078
        %v1080 = vmul.f32 %v1079, %v529
        %v1081 = vadd.f32 %v1080, 1e-06
        %v1082 = vrsqrt.pop %v1081
        %v1083 = vmul.f32 %v1075, %v1082
        %v1084 = vlaneseq
        %v1085 = vshrl.u32 %v1084, 7
        %v1086 = vsub.s32 0, %v1085
        %v1087 = vrot.slane %v521, %v1086
        %v1088 = vmul.f32 %v1083, %v1087
        %v1089 = vlaneseq
        %v1090 = vshrl.u32 %v1089, 7
        %v1091 = vsub.s32 0, %v1090
        %v1092 = vrot.slane %v522, %v1091
        %v1093 = vadd.f32 %v1088, %v1092
        %v1094 = vld [vmem:[%s501] sm:$0xff]
        %v1095 = vld [vmem:[%s501 + $0x8] sm:$0xff]
        %v1096 = vld [vmem:[%s501 + $0x10] sm:$0xff]
        %v1097 = vld [vmem:[%s501 + $0x18] sm:$0xff]
        %v1098 = vlaneseq
        %v1099 = vshrl.u32 %v1098, 7
        %v1100 = vsub.s32 0, %v1099
        %v1101 = vrot.slane %v523, %v1100
        %v1103 = vsel %vm525, %v1093, 0
        %1105 = vmatprep.subr.mxu0 0.0
        %1106 = vmatpush1.msra.mxu0 %v1094
        %1107 = vmatprep.subr.mxu0 0.0
        %1108 = vmatpush1.msra.mxu0 %v1095
        %1109 = vmatprep.subr.mxu0 0.0
        %1110 = vmatpush1.msra.mxu0 %v1096
        %1111 = vmatprep.subr.mxu0 0.0
        %1112 = vmatpush1.msra.mxu0 %v1097
        %1113 = vmatprep.subr.mxu0 0.0
        %1114 = vmatpush1.msra.mxu0 0.0
        %1115 = vmatprep.subr.mxu0 0.0
        %1116 = vmatpush1.msra.mxu0 0.0
        %1117 = vmatprep.subr.mxu0 0.0
        %1118 = vmatpush1.msra.mxu0 0.0
        %1119 = vmatprep.subr.mxu0 0.0
        %1120 = vmatpush1.msra.mxu0 0.0
        %1121 = vmatprep.subr.mxu0 0.0
        %1122 = vmatpush1.msra.mxu0 0.0
        %1123 = vmatprep.subr.mxu0 0.0
        %1124 = vmatpush1.msra.mxu0 0.0
        %1125 = vmatprep.subr.mxu0 0.0
        %1126 = vmatpush1.msra.mxu0 0.0
        %1127 = vmatprep.subr.mxu0 0.0
        %1128 = vmatpush1.msra.mxu0 0.0
        %1129 = vmatprep.subr.mxu0 0.0
        %1130 = vmatpush1.msra.mxu0 0.0
        %1131 = vmatprep.subr.mxu0 0.0
        %1132 = vmatpush1.msra.mxu0 0.0
        %1133 = vmatprep.subr.mxu0 0.0
        %1134 = vmatpush1.msra.mxu0 0.0
        %1135 = vmatprep.subr.mxu0 0.0
        %1136 = vmatpush1.msra.mxu0 0.0
        %1137 = vmatprep.subr.mxu0 0.0
        %1138 = vmatpush1.msra.mxu0 0.0
        %1139 = vmatprep.subr.mxu0 0.0
        %1140 = vmatpush1.msra.mxu0 0.0
        %1141 = vmatprep.subr.mxu0 0.0
        %1142 = vmatpush1.msra.mxu0 0.0
        %1143 = vmatprep.subr.mxu0 0.0
        %1144 = vmatpush1.msra.mxu0 0.0
        %1145 = vmatprep.subr.mxu0 0.0
        %1146 = vmatpush1.msra.mxu0 0.0
        %1147 = vmatprep.subr.mxu0 0.0
        %1148 = vmatpush1.msra.mxu0 0.0
        %1149 = vmatprep.subr.mxu0 0.0
        %1150 = vmatpush1.msra.mxu0 0.0
        %1151 = vmatprep.subr.mxu0 0.0
        %1152 = vmatpush1.msra.mxu0 0.0
        %1153 = vmatprep.subr.mxu0 0.0
        %1154 = vmatpush1.msra.mxu0 0.0
        %1155 = vmatprep.subr.mxu0 0.0
        %1156 = vmatpush1.msra.mxu0 0.0
        %1157 = vmatprep.subr.mxu0 0.0
        %1158 = vmatpush1.msra.mxu0 0.0
        %1159 = vmatprep.subr.mxu0 0.0
        %1160 = vmatpush1.msra.mxu0 0.0
        %1161 = vmatprep.subr.mxu0 0.0
        %1162 = vmatpush1.msra.mxu0 0.0
        %1163 = vmatprep.subr.mxu0 0.0
        %1164 = vmatpush1.msra.mxu0 0.0
        %1165 = vmatprep.subr.mxu0 0.0
        %1166 = vmatpush1.msra.mxu0 0.0
        %1167 = vmatprep.subr.mxu0 0.0
        %1168 = vmatpush1.msra.mxu0 0.0
        %1169 = vmatprep.mubr.f32.mxu0 0.0
        %1170 = vmatmul.mubr.f32.gmra.mrb[0].mxu0 %v1103
        %v1171 = vpop.f32.mrb[0].mxu0
        %v1172 = vadd.f32 %v1101, %v1171
        %v1173 = vpop.f32.mrb[0].mxu0
        %1174 = vdwg.mxu0
        %v1175 = vmul.f32 %v1172, 0.5
        %v1176 = vmul.f32 %v1172, 0.044715
        %v1177 = vmul.f32 %v1176, %v1172
        %v1178 = vmul.f32 %v1177, %v1172
        %v1179 = vadd.f32 %v1172, %v1178
        %v1180 = vmul.f32 %v1179, 0.7978846
        %v1181 = vtanh.pop %v1180
        %v1182 = vadd.f32 %v1181, 1.0
        %v1183 = vmul.f32 %v1175, %v1182
        %v1184 = vld [vmem:[%s506] sm:$0xff]
        %v1185 = vld [vmem:[%s506 + $0x8] sm:$0xff]
        %v1186 = vld [vmem:[%s506 + $0x10] sm:$0xff]
        %v1187 = vld [vmem:[%s506 + $0x18] sm:$0xff]
        %v1188 = vld [vmem:[%s506 + $0x20] sm:$0xff]
        %v1189 = vld [vmem:[%s506 + $0x28] sm:$0xff]
        %v1190 = vld [vmem:[%s506 + $0x30] sm:$0xff]
        %v1191 = vld [vmem:[%s506 + $0x38] sm:$0xff]
        %v1192 = vlaneseq
        %v1193 = vshrl.u32 %v1192, 7
        %v1194 = vsub.s32 0, %v1193
        %v1195 = vrot.slane %v524, %v1194
        %vm1196 = vcmask 523264
        %v1198 = vsel %vm1196, %v1183, 0
        %1200 = vmatprep.subr.mxu0 0.0
        %1201 = vmatpush1.msra.mxu0 %v1184
        %1202 = vmatprep.subr.mxu0 0.0
        %1203 = vmatpush1.msra.mxu0 %v1185
        %1204 = vmatprep.subr.mxu0 0.0
        %1205 = vmatpush1.msra.mxu0 %v1186
        %1206 = vmatprep.subr.mxu0 0.0
        %1207 = vmatpush1.msra.mxu0 %v1187
        %1208 = vmatprep.subr.mxu0 0.0
        %1209 = vmatpush1.msra.mxu0 %v1188
        %1210 = vmatprep.subr.mxu0 0.0
        %1211 = vmatpush1.msra.mxu0 %v1189
        %1212 = vmatprep.subr.mxu0 0.0
        %1213 = vmatpush1.msra.mxu0 %v1190
        %1214 = vmatprep.subr.mxu0 0.0
        %1215 = vmatpush1.msra.mxu0 %v1191
        %1216 = vmatprep.subr.mxu0 0.0
        %1217 = vmatpush1.msra.mxu0 0.0
        %1218 = vmatprep.subr.mxu0 0.0
        %1219 = vmatpush1.msra.mxu0 0.0
        %1220 = vmatprep.subr.mxu0 0.0
        %1221 = vmatpush1.msra.mxu0 0.0
        %1222 = vmatprep.subr.mxu0 0.0
        %1223 = vmatpush1.msra.mxu0 0.0
        %1224 = vmatprep.subr.mxu0 0.0
        %1225 = vmatpush1.msra.mxu0 0.0
        %1226 = vmatprep.subr.mxu0 0.0
        %1227 = vmatpush1.msra.mxu0 0.0
        %1228 = vmatprep.subr.mxu0 0.0
        %1229 = vmatpush1.msra.mxu0 0.0
        %1230 = vmatprep.subr.mxu0 0.0
        %1231 = vmatpush1.msra.mxu0 0.0
        %1232 = vmatprep.subr.mxu0 0.0
        %1233 = vmatpush1.msra.mxu0 0.0
        %1234 = vmatprep.subr.mxu0 0.0
        %1235 = vmatpush1.msra.mxu0 0.0
        %1236 = vmatprep.subr.mxu0 0.0
        %1237 = vmatpush1.msra.mxu0 0.0
        %1238 = vmatprep.subr.mxu0 0.0
        %1239 = vmatpush1.msra.mxu0 0.0
        %1240 = vmatprep.subr.mxu0 0.0
        %1241 = vmatpush1.msra.mxu0 0.0
        %1242 = vmatprep.subr.mxu0 0.0
        %1243 = vmatpush1.msra.mxu0 0.0
        %1244 = vmatprep.subr.mxu0 0.0
        %1245 = vmatpush1.msra.mxu0 0.0
        %1246 = vmatprep.subr.mxu0 0.0
        %1247 = vmatpush1.msra.mxu0 0.0
        %1248 = vmatprep.subr.mxu0 0.0
        %1249 = vmatpush1.msra.mxu0 0.0
        %1250 = vmatprep.subr.mxu0 0.0
        %1251 = vmatpush1.msra.mxu0 0.0
        %1252 = vmatprep.subr.mxu0 0.0
        %1253 = vmatpush1.msra.mxu0 0.0
        %1254 = vmatprep.subr.mxu0 0.0
        %1255 = vmatpush1.msra.mxu0 0.0
        %1256 = vmatprep.subr.mxu0 0.0
        %1257 = vmatpush1.msra.mxu0 0.0
        %1258 = vmatprep.subr.mxu0 0.0
        %1259 = vmatpush1.msra.mxu0 0.0
        %1260 = vmatprep.subr.mxu0 0.0
        %1261 = vmatpush1.msra.mxu0 0.0
        %1262 = vmatprep.subr.mxu0 0.0
        %1263 = vmatpush1.msra.mxu0 0.0
        %1264 = vmatprep.mubr.f32.mxu0 0.0
        %1265 = vmatmul.mubr.f32.gmra.mrb[0].mxu0 %v1198
        %v1266 = vpop.f32.mrb[0].mxu0
        %v1267 = vadd.f32 %v1195, %v1266
        %v1268 = vpop.f32.mrb[0].mxu0
        %1269 = vdwg.mxu0
        %v1270 = vadd.f32 %v1070, %v1267
        %1271 = vst.msk [vmem:[%s467] sm:$0xff] %vm525, %v1270
        %s1272 = sand.u32 %s294, 1
        %s1273 = scalar_lea.sflag [#allocation3], %s1272
        %s1274 = sand.u32 %s294, 1
        %s1275 = smul.addr %s1274, 8
        %s1276 = scalar_lea.vmem [#allocation2], %s1275
        // Predicated region
        $region65: #{tpu_custom_call.1} parent=59 // pred_check
          %p1277 = pneg %p304
        $region66: #{tpu_custom_call.1} parent=59 // pred_check_branch
          %1279 = sbr.rel (%p1277) target = $region68
        $region67: #{tpu_custom_call.1} parent=59 // pred_region
          %s1281 = ssub.s32 128, 128
          %1282 = vsyncadd %s1273, %s1281
          %s1283 = smul.addr %s28, 128
          %s1284 = scalar_lea.hbm %s10, %s1283
          %s1286 = sshll.u32 %s1276, 4
          %s1287 = int_to_ptr.vmem [resolvable:$true] %s1286
          %1289 = dma.vmem_to_hbm [thread:$0]  %s1287, 128, %s1284, %s1273
        $region68: #{tpu_custom_call.1} parent=59 // pred_fallthru
          _
      $region60: #{tpu_custom_call.1} parent=5 // pred_fallthru
        _
      %p1290 = scmp.le.s32.totalorder 2, %s19
      // Predicated region
      $region69: #{tpu_custom_call.1} parent=5 // pred_check
        %p1291 = pneg %p1290
      $region70: #{tpu_custom_call.1} parent=5 // pred_check_branch
        %1293 = sbr.rel (%p1291) target = $region72
      $region71: #{tpu_custom_call.1} parent=5 // pred_region
        %s1294 = ssub.s32 %s19, 2
        // Predicated region
        $region73: #{tpu_custom_call.1} parent=71 // pred_check
          %p1295 = pneg %p310
        $region74: #{tpu_custom_call.1} parent=71 // pred_check_branch
          %1297 = sbr.rel (%p1295) target = $region76
        $region75: #{tpu_custom_call.1} parent=71 // pred_region
          %s1298 = sand.u32 %s295, 1
          %s1299 = scalar_lea.sflag [#allocation3], %s1298
          %s1300 = sand.u32 %s295, 1
          %s1301 = smul.addr %s1300, 8
          %s1302 = scalar_lea.vmem [#allocation2], %s1301
          %1303 = dma.done %s1299, 128
        $region76: #{tpu_custom_call.1} parent=71 // pred_fallthru
          _
      $region72: #{tpu_custom_call.1} parent=5 // pred_fallthru
        _
    $region6: #{tpu_custom_call.1} parent=1 // loop_footer
      %s23 = sadd.s32 1, %s19
    $region7: #{tpu_custom_call.1} parent=1 // loop_footer_branch
      %18 = sbr.rel target = $region3
    $region8: #{tpu_custom_call.1} parent=1 // loop_exit
      _
    %1304 = vsyncpa [#allocation3], 1
    %s1305 = scalar_lea.sflag [#allocation3], 1
    %1306 = vsyncpa %s1305, 1

</llo_original>
